<compile_context>
chip_gen: v6e
topology: v6e:2x2x1
jax: 0.10.0
libtpu: 0.0.40
codegen_flags: <defaults>
</compile_context>

<pallas_src>
import jax
import jax.numpy as jnp
from jax.experimental import pallas as pl
from jax.experimental.pallas import tpu as pltpu

MLP_DIM = 768          # config['ImageReward']['mlp_dim'] for BLIP text width
HIDDENS = (1024, 128, 64, 16, 2)
N_OUT = HIDDENS[-1]

_MIN_PALLAS_BATCH = 512   # below this, let XLA fuse a plain matmul
_BM_ALIGN = 16            # bf16 sublane packing (16 rows per vreg)


def _round_up(x, m):
    return ((x + m - 1) // m) * m


# ----------------------------------------------------------------------------
# Kernel: one fused affine map per batch tile.
# ----------------------------------------------------------------------------
def _head_kernel(x_ref, w_ref, b_ref, o_ref):
    # Single MXU matmul (bf16 inputs, f32 accumulation); bias add on the VPU.
    o_ref[...] = (
        jnp.dot(x_ref[...], w_ref[...], preferred_element_type=jnp.float32)
        + b_ref[...]
    ).astype(o_ref.dtype)


# ----------------------------------------------------------------------------
# Parameter handling (done ONCE, outside the per-call path).
# ----------------------------------------------------------------------------
def init_mlp_params(key, input_size=MLP_DIM):
    """Init matching MLP.__init__: weight ~ N(0, 1/(D+1)), bias = 0."""
    dims = (input_size,) + HIDDENS
    std = 1.0 / (input_size + 1)
    params = []
    for i in range(len(HIDDENS)):
        key, sub = jax.random.split(key)
        w = std * jax.random.normal(sub, (dims[i], dims[i + 1]), dtype=jnp.float32)
        b = jnp.zeros((1, dims[i + 1]), dtype=jnp.float32)
        params.append((w, b))
    return params


def fold_mlp_params(params):
    """Fold Linear->Dropout(eval)->...->Linear into one (D, 2) affine map.

    Exact in eval mode because dropout is the identity and there are no
    nonlinearities between the Linear layers.
    # TODO(synk): training-mode dropout (p=0.2/0.2/0.1) is not representable
    # as a static fold; this implements inference/eval semantics.
    """
    (w1, b1) = params[0]
    w_eff = w1
    b_eff = b1
    for (w, b) in params[1:]:
        w_eff = w_eff @ w          # (D, n_out)
        b_eff = b_eff @ w + b      # (1, n_out)
    return w_eff.astype(jnp.float32), b_eff.astype(jnp.float32)


def prepare_head_params(params):
    """One-time fold + cast.  Call once; pass the result to every forward."""
    w_eff, b_eff = fold_mlp_params(params)
    w_eff_bf16 = jax.device_put(w_eff.astype(jnp.bfloat16))
    b_eff_f32 = jax.device_put(b_eff)                     # keep bias in f32
    return w_eff_bf16, b_eff_f32


# ----------------------------------------------------------------------------
# Wrapper: pad batch to a multiple of the tile, run the Pallas kernel, slice.
# ----------------------------------------------------------------------------
def mlp_forward_pallas(x, w_eff_bf16, b_eff, *, bm=1024):
    """x: (B, D) float32 -> (B, 2) float32.

    Uses a single-matmul Pallas kernel tiled over batch for large B, and a
    plain fused XLA matmul for small B (launch overhead would dominate).
    """
    B, D = x.shape

    # Small-batch fallback: one tiny matmul, let XLA fuse it (exact f32).
    if B < _MIN_PALLAS_BATCH:
        return (x @ w_eff_bf16.astype(jnp.float32)) + b_eff

    # bf16 activations halve HBM read traffic; accumulation stays f32.
    x = x.astype(jnp.bfloat16)

    # Batch tile: bf16-sublane aligned (multiple of 16), capped both by the
    # requested bm and by ceil(B/2) so the "parallel" grid always has >= 2
    # steps -> both v7x TensorCores get work (no-op on v5e/v6e single-TC).
    bm = max(_BM_ALIGN, min(_round_up(bm, _BM_ALIGN),
                            _round_up(pl.cdiv(B, 2), _BM_ALIGN)))
    B_pad = _round_up(B, bm)
    if B_pad != B:
        x = jnp.pad(x, ((0, B_pad - B), (0, 0)))

    cost = pl.CostEstimate(
        flops=2 * B_pad * D * N_OUT,
        bytes_accessed=B_pad * D * 2 + D * N_OUT * 2 + N_OUT * 4 + B_pad * N_OUT * 4,
        transcendentals=0,
    )

    out = pl.pallas_call(
        _head_kernel,
        out_shape=jax.ShapeDtypeStruct((B_pad, N_OUT), jnp.float32),
        grid_spec=pltpu.PrefetchScalarGridSpec(
            num_scalar_prefetch=0,
            grid=(B_pad // bm,),
            in_specs=[
                # Batch tile of activations (the only per-step HBM traffic).
                pl.BlockSpec((bm, D), lambda i: (i, 0)),
                # Grid-invariant folded weight (~3 KB bf16) and bias.
                pl.BlockSpec((D, N_OUT), lambda i: (0, 0)),
                pl.BlockSpec((1, N_OUT), lambda i: (0, 0)),
            ],
            out_specs=pl.BlockSpec((bm, N_OUT), lambda i: (i, 0)),
        ),
        compiler_params=pltpu.CompilerParams(
            dimension_semantics=("parallel",),
        ),
        cost_estimate=cost,
    )(x, w_eff_bf16, b_eff)

    return out[:B]


def div_reward_forward(emb_text, emb_img_1, emb_img_2, head_params):
    """Mirror of DivReward.forward: prob_data = MLP(emb_text); image embeddings pass through."""
    # TODO(synk): encode_pair (BLIP visual/text encoders) is an external
    # pretrained backbone; its CLS embeddings are provided as inputs here.
    w_eff_bf16, b_eff = head_params
    prob_data = mlp_forward_pallas(emb_text, w_eff_bf16, b_eff)
    return prob_data, emb_img_1, emb_img_2


if __name__ == "__main__":
    key = jax.random.PRNGKey(0)
    k_params, k_text, k_img1, k_img2, k_big = jax.random.split(key, 5)

    B = 16
    IMG_WIDTH = 1024  # visual encoder hidden width (ViT CLS embedding)

    params = init_mlp_params(k_params, MLP_DIM)
    head_params = prepare_head_params(params)   # fold ONCE, outside the call path

    # Pure-JAX reference: the original (unfolded) 5-layer eval-mode chain.
    def ref_chain(x):
        y = x
        for (w, b) in params:
            y = y @ w + b
        return y

    # ---- Small-batch path (plain fused matmul fallback) ----
    emb_text = jax.random.normal(k_text, (B, MLP_DIM), dtype=jnp.float32)
    emb_img_1 = jax.random.normal(k_img1, (B, IMG_WIDTH), dtype=jnp.float32)
    emb_img_2 = jax.random.normal(k_img2, (B, IMG_WIDTH), dtype=jnp.float32)

    prob_data, out_img_1, out_img_2 = div_reward_forward(
        emb_text, emb_img_1, emb_img_2, head_params)
    jax.block_until_ready(prob_data)

    ref_small = ref_chain(emb_text)
    assert prob_data.shape == (B, N_OUT)
    assert out_img_1.shape == (B, IMG_WIDTH) and out_img_2.shape == (B, IMG_WIDTH)
    assert jnp.allclose(prob_data, ref_small, atol=1e-6, rtol=1e-4)

    # ---- Large-batch path (exercises the Pallas kernel, 2-step parallel grid) ----
    B_big = 640
    emb_text_big = jax.random.normal(k_big, (B_big, MLP_DIM), dtype=jnp.float32)
    prob_big, _, _ = div_reward_forward(emb_text_big, emb_img_1, emb_img_2, head_params)
    jax.block_until_ready(prob_big)

    ref_big = ref_chain(emb_text_big)
    assert prob_big.shape == (B_big, N_OUT)
    # bf16 activations/weights -> compare with a relative tolerance.
    scale = jnp.max(jnp.abs(ref_big)) + 1e-30
    rel_err = jnp.max(jnp.abs(prob_big - ref_big)) / scale
    assert float(rel_err) < 2e-2, f"relative error too large: {float(rel_err)}"

    print("KERNEL_OK")
</pallas_src>

<mosaic_0001>
module attributes {stable_mosaic.version = 11 : i64} {
  func.func @_head_kernel(%arg0: i32, %arg1: memref<320x768xbf16, #tpu.memory_space<vmem>>, %arg2: memref<768x2xbf16, #tpu.memory_space<vmem>>, %arg3: memref<1x2xf32, #tpu.memory_space<vmem>>, %arg4: memref<320x2xf32, #tpu.memory_space<vmem>>) attributes {dimension_semantics = [#tpu.dimension_semantics<parallel>], iteration_bounds = array<i64: 2>, scalar_prefetch = 0 : i64, scratch_operands = 0 : i64, tpu.core_type = #tpu.core_type<tc>, window_params = [{transform_indices = @transform_0, window_bounds = array<i64: 320, 768>}, {pipeline_mode = #tpu.pipeline_mode<synchronous>, transform_indices = @transform_1, window_bounds = array<i64: 768, 2>}, {pipeline_mode = #tpu.pipeline_mode<synchronous>, transform_indices = @transform_2, window_bounds = array<i64: 1, 2>}, {transform_indices = @transform_3, window_bounds = array<i64: 320, 2>}]} {
    %c0 = arith.constant 0 : index
    %c0_0 = arith.constant 0 : index
    %0 = vector.load %arg1[%c0, %c0_0] : memref<320x768xbf16, #tpu.memory_space<vmem>>, vector<320x768xbf16>
    %c0_1 = arith.constant 0 : index
    %c0_2 = arith.constant 0 : index
    %1 = vector.load %arg2[%c0_1, %c0_2] : memref<768x2xbf16, #tpu.memory_space<vmem>>, vector<768x2xbf16>
    %cst = arith.constant dense<0.000000e+00> : vector<320x2xf32>
    %2 = tpu.matmul %0, %1, %cst {dimension_numbers = #tpu.dot_dimension_numbers<[1], [0], [0], [1], [0, 0, 1, 1], [], []>} : vector<320x768xbf16>, vector<768x2xbf16>, vector<320x2xf32> -> vector<320x2xf32>
    %c0_3 = arith.constant 0 : index
    %c0_4 = arith.constant 0 : index
    %3 = vector.load %arg3[%c0_3, %c0_4] : memref<1x2xf32, #tpu.memory_space<vmem>>, vector<1x2xf32>
    %4 = vector.broadcast %3 : vector<1x2xf32> to vector<320x2xf32>
    %5 = arith.addf %2, %4 : vector<320x2xf32>
    %c0_5 = arith.constant 0 : index
    %c0_6 = arith.constant 0 : index
    %6 = vector.load %arg4[%c0_5, %c0_6] : memref<320x2xf32, #tpu.memory_space<vmem>>, vector<320x2xf32>
    tpu.vector_store %arg4[%c0_5, %c0_6], %5 {strides = array<i32>} : memref<320x2xf32, #tpu.memory_space<vmem>>, vector<320x2xf32>,
    return
  }
  func.func @transform_0(%arg0: i32) -> (i32, i32) {
    %c0_i32 = arith.constant 0 : i32
    %c0_i32_0 = arith.constant 0 : i32
    return %arg0, %c0_i32 : i32, i32
  }
  func.func @transform_1(%arg0: i32) -> (i32, i32) {
    %c0_i32 = arith.constant 0 : i32
    %c0_i32_0 = arith.constant 0 : i32
    %c0_i32_1 = arith.constant 0 : i32
    return %c0_i32, %c0_i32_0 : i32, i32
  }
  func.func @transform_2(%arg0: i32) -> (i32, i32) {
    %c0_i32 = arith.constant 0 : i32
    %c0_i32_0 = arith.constant 0 : i32
    %c0_i32_1 = arith.constant 0 : i32
    return %c0_i32, %c0_i32_0 : i32, i32
  }
  func.func @transform_3(%arg0: i32) -> (i32, i32) {
    %c0_i32 = arith.constant 0 : i32
    %c0_i32_0 = arith.constant 0 : i32
    return %arg0, %c0_i32 : i32, i32
  }
}

</mosaic_0001>

<llo_original>
// kernel: tpu_custom_call.1
$region0: #{tpu_custom_call.1}
  #allocation0 [shape = 'u32[]', space=smem, size = 0x4, offset = 0x4, fixed_abs, tag = 'smem constant byte address 0x4 - core index']
  #allocation1 [shape = 'u32[144,128]{1,0:T(1,128)}', space=vmem, size = 0x12000, scoped, tag = 'internal scratch']
  %s0 = inlined_call_operand.hbm [shape: bf16[640,768], index: 0, kind: input, shape index: {}]
  %s1 = inlined_call_operand.vmem [shape: bf16[768,2], index: 1, kind: input, shape index: {}]
  %s2 = inlined_call_operand.vmem [shape: f32[1,2], index: 2, kind: input, shape index: {}]
  %s3 = inlined_call_operand.vmem [shape: f32[640,2], index: 3, kind: output, shape index: {}]
  %s4 = sld [smem:[#allocation0]]
  $region49: #{tpu_custom_call.1} parent=0
    _
  %s6 = ssub.s32 1, %s4
  %s7 = scalar_select 0, %s6, %s4
  $region1: #{tpu_custom_call.1} parent=0
    #allocation2 [shape = 'u8[983040]{0}', space=vmem, size = 0xf0000, scoped, tag = 'input window, operand 0']
    #allocation3 [shape = 's32[2]{0}', space=sflag, size = 0x8, scoped, tag = 'scoped memory for tpu_custom_call.1']
    %8 = vsyncpa [#allocation3], 0
    %s9 = scalar_lea.sflag [#allocation3], 1
    %10 = vsyncpa %s9, 0
    loop: start=0, step=1, limit=4
    $region2: #{tpu_custom_call.1} parent=1 // loop_pre_header
      _
    $region3: #{tpu_custom_call.1} parent=1 // loop_header
      %s12 = sphi 0, %s16
      %p13 = scmp.ge.s32.totalorder %s12, 4
      %s22 = sphi 0, %s24
      %s25 = sphi 0, %s22
      %s26 = sphi 0, %s25
      %s42 = sphi 0, %s26
      %s46 = sphi 0, %s46
      %s48 = sphi 0, %s46
      %s49 = sphi 0, %s48
      %s63 = sphi 0, %s49
      %s67 = sphi 0, %s67
      %s69 = sphi 0, %s67
      %s70 = sphi 0, %s69
      %s84 = sphi 0, %s70
      %s90 = sphi 0, %s92
      %s93 = sphi 0, %s90
      %s94 = sphi 0, %s93
      %s110 = sphi 0, %s94
    $region4: #{tpu_custom_call.1} parent=1 // loop_header_branch
      %15 = sbr.rel (%p13) target = $region8
    $region5: #{tpu_custom_call.1} parent=1 // loop_body
      %s17 = ssub.s32 %s12, 1
      %s18 = ssub.s32 %s12, 2
      %s19 = sadd.s32 %s12, 1
      %s20 = ssub.s32 %s12, %s19
      %p21 = scmp.eq.s32.totalorder %s20, 0
      %s23 = sadd.s32 %s22, 1
      %s24 = scalar_select %p21, %s22, %s23
      %p27 = pneg %p21
      %p28 = scmp.eq.s32.totalorder %s12, 1
      %p29 = por %p27, %p28
      %p30 = scmp.ne.s32.totalorder %s22, %s25
      %p31 = scmp.eq.s32.totalorder %s12, 0
      %p32 = por %p30, %p31
      %p33 = scmp.ne.s32.totalorder %s22, %s25
      %p34 = scmp.eq.s32.totalorder %s17, 1
      %p35 = por %p33, %p34
      %p36 = scmp.ne.s32.totalorder %s25, %s26
      %p37 = scmp.eq.s32.totalorder %s17, 0
      %p38 = por %p36, %p37
      %p39 = scmp.ne.s32.totalorder %s25, %s26
      %p40 = scmp.eq.s32.totalorder %s18, 1
      %p41 = por %p39, %p40
      %p43 = scmp.ne.s32.totalorder %s26, %s42
      %p44 = scmp.eq.s32.totalorder %s18, 0
      %p45 = por %p43, %p44
      %s47 = sadd.s32 %s46, 1
      %p50 = scmp.eq.s32.totalorder %s12, 1
      %p51 = scmp.ne.s32.totalorder %s46, %s48
      %p52 = scmp.eq.s32.totalorder %s12, 0
      %p53 = por %p51, %p52
      %p54 = scmp.ne.s32.totalorder %s46, %s48
      %p55 = scmp.eq.s32.totalorder %s17, 1
      %p56 = por %p54, %p55
      %p57 = scmp.ne.s32.totalorder %s48, %s49
      %p58 = scmp.eq.s32.totalorder %s17, 0
      %p59 = por %p57, %p58
      %p60 = scmp.ne.s32.totalorder %s48, %s49
      %p61 = scmp.eq.s32.totalorder %s18, 1
      %p62 = por %p60, %p61
      %p64 = scmp.ne.s32.totalorder %s49, %s63
      %p65 = scmp.eq.s32.totalorder %s18, 0
      %p66 = por %p64, %p65
      %s68 = sadd.s32 %s67, 1
      %p71 = scmp.eq.s32.totalorder %s12, 1
      %p72 = scmp.ne.s32.totalorder %s67, %s69
      %p73 = scmp.eq.s32.totalorder %s12, 0
      %p74 = por %p72, %p73
      %p75 = scmp.ne.s32.totalorder %s67, %s69
      %p76 = scmp.eq.s32.totalorder %s17, 1
      %p77 = por %p75, %p76
      %p78 = scmp.ne.s32.totalorder %s69, %s70
      %p79 = scmp.eq.s32.totalorder %s17, 0
      %p80 = por %p78, %p79
      %p81 = scmp.ne.s32.totalorder %s69, %s70
      %p82 = scmp.eq.s32.totalorder %s18, 1
      %p83 = por %p81, %p82
      %p85 = scmp.ne.s32.totalorder %s70, %s84
      %p86 = scmp.eq.s32.totalorder %s18, 0
      %p87 = por %p85, %p86
      %s88 = ssub.s32 %s12, %s19
      %p89 = scmp.eq.s32.totalorder %s88, 0
      %s91 = sadd.s32 %s90, 1
      %s92 = scalar_select %p89, %s90, %s91
      %p95 = pneg %p89
      %p96 = scmp.eq.s32.totalorder %s12, 1
      %p97 = por %p95, %p96
      %p98 = scmp.ne.s32.totalorder %s90, %s93
      %p99 = scmp.eq.s32.totalorder %s12, 0
      %p100 = por %p98, %p99
      %p101 = scmp.ne.s32.totalorder %s90, %s93
      %p102 = scmp.eq.s32.totalorder %s17, 1
      %p103 = por %p101, %p102
      %p104 = scmp.ne.s32.totalorder %s93, %s94
      %p105 = scmp.eq.s32.totalorder %s17, 0
      %p106 = por %p104, %p105
      %p107 = scmp.ne.s32.totalorder %s93, %s94
      %p108 = scmp.eq.s32.totalorder %s18, 1
      %p109 = por %p107, %p108
      %p111 = scmp.ne.s32.totalorder %s94, %s110
      %p112 = scmp.eq.s32.totalorder %s18, 0
      %p113 = por %p111, %p112
      %p114 = scmp.le.s32.totalorder 1, %s12
      %p115 = scmp.lt.s32.totalorder %s12, 3
      %p116 = pnand %p114, %p115
      %p117 = pneg %p116
      // Predicated region
      $region9: #{tpu_custom_call.1} parent=5 // pred_check
        _
      $region10: #{tpu_custom_call.1} parent=5 // pred_check_branch
        %119 = sbr.rel (%p116) target = $region12
      $region11: #{tpu_custom_call.1} parent=5 // pred_region
        %s120 = ssub.s32 %s12, 1
        // Predicated region
        $region13: #{tpu_custom_call.1} parent=11 // pred_check
          %p121 = pneg %p59
        $region14: #{tpu_custom_call.1} parent=11 // pred_check_branch
          %123 = sbr.rel (%p121) target = $region16
        $region15: #{tpu_custom_call.1} parent=11 // pred_region
          _
        $region16: #{tpu_custom_call.1} parent=11 // pred_fallthru
          _
        // Predicated region
        $region17: #{tpu_custom_call.1} parent=11 // pred_check
          %p124 = pneg %p80
        $region18: #{tpu_custom_call.1} parent=11 // pred_check_branch
          %126 = sbr.rel (%p124) target = $region20
        $region19: #{tpu_custom_call.1} parent=11 // pred_region
          _
        $region20: #{tpu_custom_call.1} parent=11 // pred_fallthru
          _
      $region12: #{tpu_custom_call.1} parent=5 // pred_fallthru
        _
      %p127 = scmp.lt.s32.totalorder %s12, 2
      // Predicated region
      $region21: #{tpu_custom_call.1} parent=5 // pred_check
        %p128 = pneg %p127
      $region22: #{tpu_custom_call.1} parent=5 // pred_check_branch
        %130 = sbr.rel (%p128) target = $region24
      $region23: #{tpu_custom_call.1} parent=5 // pred_region
        // Predicated region
        $region25: #{tpu_custom_call.1} parent=23 // pred_check
          %p131 = pneg %p32
        $region26: #{tpu_custom_call.1} parent=23 // pred_check_branch
          %133 = sbr.rel (%p131) target = $region28
        $region27: #{tpu_custom_call.1} parent=23 // pred_region
          %s134 = sand.u32 %s22, 1
          %s135 = scalar_lea.sflag [#allocation3], %s134
          %s136 = sand.u32 %s22, 1
          %s137 = smul.addr %s136, 960
          %s138 = scalar_lea.vmem [#allocation2], %s137
          %s139 = smul.u32 40, %s12
          %s141 = ssub.s32 15360, 15360
          %142 = vsyncadd %s135, %s141
          %s143 = smul.addr %s139, 6
          %s144 = smul.addr %s143, 64
          %s145 = scalar_lea.hbm %s0, %s144
          %s146 = sshll.u32 %s138, 4
          %s147 = int_to_ptr.vmem [resolvable:$true] %s146
          %152 = dma.hbm_to_vmem [thread:$0]  %s145, 15360, %s147, %s135, 384, 384, 24
        $region28: #{tpu_custom_call.1} parent=23 // pred_fallthru
          _
      $region24: #{tpu_custom_call.1} parent=5 // pred_fallthru
        _
      %p153 = scmp.le.s32.totalorder 1, %s12
      %p154 = scmp.lt.s32.totalorder %s12, 3
      %p155 = pnand %p153, %p154
      %p156 = pneg %p155
      // Predicated region
      $region29: #{tpu_custom_call.1} parent=5 // pred_check
        _
      $region30: #{tpu_custom_call.1} parent=5 // pred_check_branch
        %158 = sbr.rel (%p155) target = $region32
      $region31: #{tpu_custom_call.1} parent=5 // pred_region
        %s159 = ssub.s32 %s12, 1
        %s160 = sand.u32 %s25, 1
        %s161 = scalar_lea.sflag [#allocation3], %s160
        %s162 = sand.u32 %s25, 1
        %s163 = smul.addr %s162, 960
        %s164 = scalar_lea.vmem [#allocation2], %s163
        // Predicated region
        $region33: #{tpu_custom_call.1} parent=31 // pred_check
          %p165 = pneg %p38
        $region34: #{tpu_custom_call.1} parent=31 // pred_check_branch
          %167 = sbr.rel (%p165) target = $region36
        $region35: #{tpu_custom_call.1} parent=31 // pred_region
          %168 = dma.done %s161, 15360
        $region36: #{tpu_custom_call.1} parent=31 // pred_fallthru
          _
        %s169 = sand.u32 %s25, 1
        %s170 = scalar_lea.sflag [#allocation3], %s169
        %s171 = sand.u32 %s25, 1
        %s172 = smul.addr %s171, 960
        %s173 = scalar_lea.vmem [#allocation2], %s172
        %p174 = pneg %p38
        %p175 = pneg %p35
        %p176 = pneg %p59
        %p177 = pneg %p56
        %p178 = pneg %p80
        %p179 = pneg %p77
        %p180 = pneg %p106
        %p181 = pneg %p103
        %s182 = smul.u32 40, %s17
        %p183 = scmp.lt.s32.totalorder %s182, 79
        %s184 = scalar_select %p183, %s182, 79
        %s185 = smul.addr %s184, 8
        %s186 = scalar_lea.vmem %s3, %s185
        %s187 = smul.u32 40, %s17
        %s188 = smul.u32 40, %s17
        %p189 = scmp.lt.s32.totalorder %s188, 79
        %s190 = scalar_select %p189, %s188, 79
        %s191 = smul.addr %s190, 8
        %s192 = scalar_lea.vmem %s3, %s191
        %s193 = smul.u32 40, %s17
        %v195 = vld [vmem:[%s164] sm:$0xff]
        %v196 = vld [vmem:[%s164 + $0x8] sm:$0xff]
        %v197 = vld [vmem:[%s164 + $0x10] sm:$0xff]
        %v198 = vld [vmem:[%s164 + $0x18] sm:$0xff]
        %v199 = vld [vmem:[%s164 + $0x20] sm:$0xff]
        %v200 = vld [vmem:[%s164 + $0x28] sm:$0xff]
        %v201 = vld [vmem:[%s164 + $0x30] sm:$0xff]
        %v202 = vld [vmem:[%s164 + $0x38] sm:$0xff]
        %v203 = vld [vmem:[%s164 + $0x40] sm:$0xff]
        %v204 = vld [vmem:[%s164 + $0x48] sm:$0xff]
        %v205 = vld [vmem:[%s164 + $0x50] sm:$0xff]
        %v206 = vld [vmem:[%s164 + $0x58] sm:$0xff]
        %v207 = vld [vmem:[%s164 + $0x60] sm:$0xff]
        %v208 = vld [vmem:[%s164 + $0x68] sm:$0xff]
        %v209 = vld [vmem:[%s164 + $0x70] sm:$0xff]
        %v210 = vld [vmem:[%s164 + $0x78] sm:$0xff]
        %v211 = vld [vmem:[%s164 + $0x80] sm:$0xff]
        %v212 = vld [vmem:[%s164 + $0x88] sm:$0xff]
        %v213 = vld [vmem:[%s164 + $0x90] sm:$0xff]
        %v214 = vld [vmem:[%s164 + $0x98] sm:$0xff]
        %v215 = vld [vmem:[%s164 + $0xa0] sm:$0xff]
        %v216 = vld [vmem:[%s164 + $0xa8] sm:$0xff]
        %v217 = vld [vmem:[%s164 + $0xb0] sm:$0xff]
        %v218 = vld [vmem:[%s164 + $0xb8] sm:$0xff]
        %v219 = vld [vmem:[%s164 + $0xc0] sm:$0xff]
        %v220 = vld [vmem:[%s164 + $0xc8] sm:$0xff]
        %v221 = vld [vmem:[%s164 + $0xd0] sm:$0xff]
        %v222 = vld [vmem:[%s164 + $0xd8] sm:$0xff]
        %v223 = vld [vmem:[%s164 + $0xe0] sm:$0xff]
        %v224 = vld [vmem:[%s164 + $0xe8] sm:$0xff]
        %v225 = vld [vmem:[%s164 + $0xf0] sm:$0xff]
        %v226 = vld [vmem:[%s164 + $0xf8] sm:$0xff]
        %v227 = vld [vmem:[%s164 + $0x100] sm:$0xff]
        %v228 = vld [vmem:[%s164 + $0x108] sm:$0xff]
        %v229 = vld [vmem:[%s164 + $0x110] sm:$0xff]
        %v230 = vld [vmem:[%s164 + $0x118] sm:$0xff]
        %v231 = vld [vmem:[%s164 + $0x120] sm:$0xff]
        %v232 = vld [vmem:[%s164 + $0x128] sm:$0xff]
        %v233 = vld [vmem:[%s164 + $0x130] sm:$0xff]
        %v234 = vld [vmem:[%s164 + $0x138] sm:$0xff]
        %v235 = vld [vmem:[%s164 + $0x140] sm:$0xff]
        %v236 = vld [vmem:[%s164 + $0x148] sm:$0xff]
        %v237 = vld [vmem:[%s164 + $0x150] sm:$0xff]
        %v238 = vld [vmem:[%s164 + $0x158] sm:$0xff]
        %v239 = vld [vmem:[%s164 + $0x160] sm:$0xff]
        %v240 = vld [vmem:[%s164 + $0x168] sm:$0xff]
        %v241 = vld [vmem:[%s164 + $0x170] sm:$0xff]
        %v242 = vld [vmem:[%s164 + $0x178] sm:$0xff]
        %v243 = vld [vmem:[%s164 + $0x180] sm:$0xff]
        %v244 = vld [vmem:[%s164 + $0x188] sm:$0xff]
        %v245 = vld [vmem:[%s164 + $0x190] sm:$0xff]
        %v246 = vld [vmem:[%s164 + $0x198] sm:$0xff]
        %v247 = vld [vmem:[%s164 + $0x1a0] sm:$0xff]
        %v248 = vld [vmem:[%s164 + $0x1a8] sm:$0xff]
        %v249 = vld [vmem:[%s164 + $0x1b0] sm:$0xff]
        %v250 = vld [vmem:[%s164 + $0x1b8] sm:$0xff]
        %v251 = vld [vmem:[%s164 + $0x1c0] sm:$0xff]
        %v252 = vld [vmem:[%s164 + $0x1c8] sm:$0xff]
        %v253 = vld [vmem:[%s164 + $0x1d0] sm:$0xff]
        %v254 = vld [vmem:[%s164 + $0x1d8] sm:$0xff]
        %v255 = vld [vmem:[%s164 + $0x1e0] sm:$0xff]
        %v256 = vld [vmem:[%s164 + $0x1e8] sm:$0xff]
        %v257 = vld [vmem:[%s164 + $0x1f0] sm:$0xff]
        %v258 = vld [vmem:[%s164 + $0x1f8] sm:$0xff]
        %v259 = vld [vmem:[%s164 + $0x200] sm:$0xff]
        %v260 = vld [vmem:[%s164 + $0x208] sm:$0xff]
        %v261 = vld [vmem:[%s164 + $0x210] sm:$0xff]
        %v262 = vld [vmem:[%s164 + $0x218] sm:$0xff]
        %v263 = vld [vmem:[%s164 + $0x220] sm:$0xff]
        %v264 = vld [vmem:[%s164 + $0x228] sm:$0xff]
        %v265 = vld [vmem:[%s164 + $0x230] sm:$0xff]
        %v266 = vld [vmem:[%s164 + $0x238] sm:$0xff]
        %v267 = vld [vmem:[%s164 + $0x240] sm:$0xff]
        %v268 = vld [vmem:[%s164 + $0x248] sm:$0xff]
        %v269 = vld [vmem:[%s164 + $0x250] sm:$0xff]
        %v270 = vld [vmem:[%s164 + $0x258] sm:$0xff]
        %v271 = vld [vmem:[%s164 + $0x260] sm:$0xff]
        %v272 = vld [vmem:[%s164 + $0x268] sm:$0xff]
        %v273 = vld [vmem:[%s164 + $0x270] sm:$0xff]
        %v274 = vld [vmem:[%s164 + $0x278] sm:$0xff]
        %v275 = vld [vmem:[%s164 + $0x280] sm:$0xff]
        %v276 = vld [vmem:[%s164 + $0x288] sm:$0xff]
        %v277 = vld [vmem:[%s164 + $0x290] sm:$0xff]
        %v278 = vld [vmem:[%s164 + $0x298] sm:$0xff]
        %v279 = vld [vmem:[%s164 + $0x2a0] sm:$0xff]
        %v280 = vld [vmem:[%s164 + $0x2a8] sm:$0xff]
        %v281 = vld [vmem:[%s164 + $0x2b0] sm:$0xff]
        %v282 = vld [vmem:[%s164 + $0x2b8] sm:$0xff]
        %v283 = vld [vmem:[%s164 + $0x2c0] sm:$0xff]
        %v284 = vld [vmem:[%s164 + $0x2c8] sm:$0xff]
        %v285 = vld [vmem:[%s164 + $0x2d0] sm:$0xff]
        %v286 = vld [vmem:[%s164 + $0x2d8] sm:$0xff]
        %v287 = vld [vmem:[%s164 + $0x2e0] sm:$0xff]
        %v288 = vld [vmem:[%s164 + $0x2e8] sm:$0xff]
        %v289 = vld [vmem:[%s164 + $0x2f0] sm:$0xff]
        %v290 = vld [vmem:[%s164 + $0x2f8] sm:$0xff]
        %v291 = vld [vmem:[%s164 + $0x300] sm:$0xff]
        %v292 = vld [vmem:[%s164 + $0x308] sm:$0xff]
        %v293 = vld [vmem:[%s164 + $0x310] sm:$0xff]
        %v294 = vld [vmem:[%s164 + $0x318] sm:$0xff]
        %v295 = vld [vmem:[%s164 + $0x320] sm:$0xff]
        %v296 = vld [vmem:[%s164 + $0x328] sm:$0xff]
        %v297 = vld [vmem:[%s164 + $0x330] sm:$0xff]
        %v298 = vld [vmem:[%s164 + $0x338] sm:$0xff]
        %v299 = vld [vmem:[%s164 + $0x340] sm:$0xff]
        %v300 = vld [vmem:[%s164 + $0x348] sm:$0xff]
        %v301 = vld [vmem:[%s164 + $0x350] sm:$0xff]
        %v302 = vld [vmem:[%s164 + $0x358] sm:$0xff]
        %v303 = vld [vmem:[%s164 + $0x360] sm:$0xff]
        %v304 = vld [vmem:[%s164 + $0x368] sm:$0xff]
        %v305 = vld [vmem:[%s164 + $0x370] sm:$0xff]
        %v306 = vld [vmem:[%s164 + $0x378] sm:$0xff]
        %v307 = vld [vmem:[%s164 + $0x380] sm:$0xff]
        %v308 = vld [vmem:[%s164 + $0x388] sm:$0xff]
        %v309 = vld [vmem:[%s164 + $0x390] sm:$0xff]
        %v310 = vld [vmem:[%s164 + $0x398] sm:$0xff]
        %v311 = vld [vmem:[%s164 + $0x3a0] sm:$0xff]
        %v312 = vld [vmem:[%s164 + $0x3a8] sm:$0xff]
        %v313 = vld [vmem:[%s164 + $0x3b0] sm:$0xff]
        %v314 = vld [vmem:[%s164 + $0x3b8] sm:$0xff]
        %v315 = vld [vmem:[%s1] sm:$0xf]
        %v316 = vld [vmem:[%s1 + $0x4] sm:$0xf]
        %v317 = vld [vmem:[%s1 + $0x8] sm:$0xf]
        %v318 = vld [vmem:[%s1 + $0xc] sm:$0xf]
        %v319 = vld [vmem:[%s1 + $0x10] sm:$0xf]
        %v320 = vld [vmem:[%s1 + $0x14] sm:$0xf]
        %v321 = vld [vmem:[%s1 + $0x18] sm:$0xf]
        %v322 = vld [vmem:[%s1 + $0x1c] sm:$0xf]
        %v323 = vld [vmem:[%s1 + $0x20] sm:$0xf]
        %v324 = vld [vmem:[%s1 + $0x24] sm:$0xf]
        %v325 = vld [vmem:[%s1 + $0x28] sm:$0xf]
        %v326 = vld [vmem:[%s1 + $0x2c] sm:$0xf]
        %v327 = vld [vmem:[%s1 + $0x30] sm:$0xf]
        %v328 = vld [vmem:[%s1 + $0x34] sm:$0xf]
        %v329 = vld [vmem:[%s1 + $0x38] sm:$0xf]
        %v330 = vld [vmem:[%s1 + $0x3c] sm:$0xf]
        %v331 = vld [vmem:[%s1 + $0x40] sm:$0xf]
        %v332 = vld [vmem:[%s1 + $0x44] sm:$0xf]
        %v333 = vld [vmem:[%s1 + $0x48] sm:$0xf]
        %v334 = vld [vmem:[%s1 + $0x4c] sm:$0xf]
        %v335 = vld [vmem:[%s1 + $0x50] sm:$0xf]
        %v336 = vld [vmem:[%s1 + $0x54] sm:$0xf]
        %v337 = vld [vmem:[%s1 + $0x58] sm:$0xf]
        %v338 = vld [vmem:[%s1 + $0x5c] sm:$0xf]
        %v339 = vld [vmem:[%s1 + $0x60] sm:$0xf]
        %v340 = vld [vmem:[%s1 + $0x64] sm:$0xf]
        %v341 = vld [vmem:[%s1 + $0x68] sm:$0xf]
        %v342 = vld [vmem:[%s1 + $0x6c] sm:$0xf]
        %v343 = vld [vmem:[%s1 + $0x70] sm:$0xf]
        %v344 = vld [vmem:[%s1 + $0x74] sm:$0xf]
        %v345 = vld [vmem:[%s1 + $0x78] sm:$0xf]
        %v346 = vld [vmem:[%s1 + $0x7c] sm:$0xf]
        %v347 = vld [vmem:[%s1 + $0x80] sm:$0xf]
        %v348 = vld [vmem:[%s1 + $0x84] sm:$0xf]
        %v349 = vld [vmem:[%s1 + $0x88] sm:$0xf]
        %v350 = vld [vmem:[%s1 + $0x8c] sm:$0xf]
        %v351 = vld [vmem:[%s1 + $0x90] sm:$0xf]
        %v352 = vld [vmem:[%s1 + $0x94] sm:$0xf]
        %v353 = vld [vmem:[%s1 + $0x98] sm:$0xf]
        %v354 = vld [vmem:[%s1 + $0x9c] sm:$0xf]
        %v355 = vld [vmem:[%s1 + $0xa0] sm:$0xf]
        %v356 = vld [vmem:[%s1 + $0xa4] sm:$0xf]
        %v357 = vld [vmem:[%s1 + $0xa8] sm:$0xf]
        %v358 = vld [vmem:[%s1 + $0xac] sm:$0xf]
        %v359 = vld [vmem:[%s1 + $0xb0] sm:$0xf]
        %v360 = vld [vmem:[%s1 + $0xb4] sm:$0xf]
        %v361 = vld [vmem:[%s1 + $0xb8] sm:$0xf]
        %v362 = vld [vmem:[%s1 + $0xbc] sm:$0xf]
        %v363 = vld [vmem:[%s1 + $0xc0] sm:$0xf]
        %v364 = vld [vmem:[%s1 + $0xc4] sm:$0xf]
        %v365 = vld [vmem:[%s1 + $0xc8] sm:$0xf]
        %v366 = vld [vmem:[%s1 + $0xcc] sm:$0xf]
        %v367 = vld [vmem:[%s1 + $0xd0] sm:$0xf]
        %v368 = vld [vmem:[%s1 + $0xd4] sm:$0xf]
        %v369 = vld [vmem:[%s1 + $0xd8] sm:$0xf]
        %v370 = vld [vmem:[%s1 + $0xdc] sm:$0xf]
        %v371 = vld [vmem:[%s1 + $0xe0] sm:$0xf]
        %v372 = vld [vmem:[%s1 + $0xe4] sm:$0xf]
        %v373 = vld [vmem:[%s1 + $0xe8] sm:$0xf]
        %v374 = vld [vmem:[%s1 + $0xec] sm:$0xf]
        %v375 = vld [vmem:[%s1 + $0xf0] sm:$0xf]
        %v376 = vld [vmem:[%s1 + $0xf4] sm:$0xf]
        %v377 = vld [vmem:[%s1 + $0xf8] sm:$0xf]
        %v378 = vld [vmem:[%s1 + $0xfc] sm:$0xf]
        %v379 = vld [vmem:[%s1 + $0x100] sm:$0xf]
        %v380 = vld [vmem:[%s1 + $0x104] sm:$0xf]
        %v381 = vld [vmem:[%s1 + $0x108] sm:$0xf]
        %v382 = vld [vmem:[%s1 + $0x10c] sm:$0xf]
        %v383 = vld [vmem:[%s1 + $0x110] sm:$0xf]
        %v384 = vld [vmem:[%s1 + $0x114] sm:$0xf]
        %v385 = vld [vmem:[%s1 + $0x118] sm:$0xf]
        %v386 = vld [vmem:[%s1 + $0x11c] sm:$0xf]
        %v387 = vld [vmem:[%s1 + $0x120] sm:$0xf]
        %v388 = vld [vmem:[%s1 + $0x124] sm:$0xf]
        %v389 = vld [vmem:[%s1 + $0x128] sm:$0xf]
        %v390 = vld [vmem:[%s1 + $0x12c] sm:$0xf]
        %v391 = vld [vmem:[%s1 + $0x130] sm:$0xf]
        %v392 = vld [vmem:[%s1 + $0x134] sm:$0xf]
        %v393 = vld [vmem:[%s1 + $0x138] sm:$0xf]
        %v394 = vld [vmem:[%s1 + $0x13c] sm:$0xf]
        %v395 = vld [vmem:[%s1 + $0x140] sm:$0xf]
        %v396 = vld [vmem:[%s1 + $0x144] sm:$0xf]
        %v397 = vld [vmem:[%s1 + $0x148] sm:$0xf]
        %v398 = vld [vmem:[%s1 + $0x14c] sm:$0xf]
        %v399 = vld [vmem:[%s1 + $0x150] sm:$0xf]
        %v400 = vld [vmem:[%s1 + $0x154] sm:$0xf]
        %v401 = vld [vmem:[%s1 + $0x158] sm:$0xf]
        %v402 = vld [vmem:[%s1 + $0x15c] sm:$0xf]
        %v403 = vld [vmem:[%s1 + $0x160] sm:$0xf]
        %v404 = vld [vmem:[%s1 + $0x164] sm:$0xf]
        %v405 = vld [vmem:[%s1 + $0x168] sm:$0xf]
        %v406 = vld [vmem:[%s1 + $0x16c] sm:$0xf]
        %v407 = vld [vmem:[%s1 + $0x170] sm:$0xf]
        %v408 = vld [vmem:[%s1 + $0x174] sm:$0xf]
        %v409 = vld [vmem:[%s1 + $0x178] sm:$0xf]
        %v410 = vld [vmem:[%s1 + $0x17c] sm:$0xf]
        %v411 = vld [vmem:[%s2] sm:$0x1]
        %v413 = vlaneseq
        %v414 = vshrl.u32 %v413, 7
        %v415 = vsub.s32 0, %v414
        %v416 = vrot.slane %v411, %v415
        %v538 = vunpack.c.l.b16 %v195
        %v539 = vunpack.c.h.b16 %v195
        %v540 = vunpack.c.l.b16 %v196
        %v541 = vunpack.c.h.b16 %v196
        %v542 = vunpack.c.l.b16 %v197
        %v543 = vunpack.c.h.b16 %v197
        %v544 = vunpack.c.l.b16 %v198
        %v545 = vunpack.c.h.b16 %v198
        %v546 = vunpack.c.l.b16 %v199
        %v547 = vunpack.c.h.b16 %v199
        %v548 = vunpack.c.l.b16 %v200
        %v549 = vunpack.c.h.b16 %v200
        %v550 = vunpack.c.l.b16 %v201
        %v551 = vunpack.c.h.b16 %v201
        %v552 = vunpack.c.l.b16 %v202
        %v553 = vunpack.c.h.b16 %v202
        %v554 = vunpack.c.l.b16 %v203
        %v555 = vunpack.c.h.b16 %v203
        %v556 = vunpack.c.l.b16 %v204
        %v557 = vunpack.c.h.b16 %v204
        %v558 = vunpack.c.l.b16 %v205
        %v559 = vunpack.c.h.b16 %v205
        %v560 = vunpack.c.l.b16 %v206
        %v561 = vunpack.c.h.b16 %v206
        %v562 = vunpack.c.l.b16 %v207
        %v563 = vunpack.c.h.b16 %v207
        %v564 = vunpack.c.l.b16 %v208
        %v565 = vunpack.c.h.b16 %v208
        %v566 = vunpack.c.l.b16 %v209
        %v567 = vunpack.c.h.b16 %v209
        %v568 = vunpack.c.l.b16 %v210
        %v569 = vunpack.c.h.b16 %v210
        %v570 = vunpack.c.l.b16 %v211
        %v571 = vunpack.c.h.b16 %v211
        %v572 = vunpack.c.l.b16 %v212
        %v573 = vunpack.c.h.b16 %v212
        %v574 = vunpack.c.l.b16 %v213
        %v575 = vunpack.c.h.b16 %v213
        %v576 = vunpack.c.l.b16 %v214
        %v577 = vunpack.c.h.b16 %v214
        %v578 = vunpack.c.l.b16 %v215
        %v579 = vunpack.c.h.b16 %v215
        %v580 = vunpack.c.l.b16 %v216
        %v581 = vunpack.c.h.b16 %v216
        %v582 = vunpack.c.l.b16 %v217
        %v583 = vunpack.c.h.b16 %v217
        %v584 = vunpack.c.l.b16 %v218
        %v585 = vunpack.c.h.b16 %v218
        %v586 = vunpack.c.l.b16 %v219
        %v587 = vunpack.c.h.b16 %v219
        %v588 = vunpack.c.l.b16 %v220
        %v589 = vunpack.c.h.b16 %v220
        %v590 = vunpack.c.l.b16 %v221
        %v591 = vunpack.c.h.b16 %v221
        %v592 = vunpack.c.l.b16 %v222
        %v593 = vunpack.c.h.b16 %v222
        %v594 = vunpack.c.l.b16 %v223
        %v595 = vunpack.c.h.b16 %v223
        %v596 = vunpack.c.l.b16 %v224
        %v597 = vunpack.c.h.b16 %v224
        %v598 = vunpack.c.l.b16 %v225
        %v599 = vunpack.c.h.b16 %v225
        %v600 = vunpack.c.l.b16 %v226
        %v601 = vunpack.c.h.b16 %v226
        %v602 = vunpack.c.l.b16 %v227
        %v603 = vunpack.c.h.b16 %v227
        %v604 = vunpack.c.l.b16 %v228
        %v605 = vunpack.c.h.b16 %v228
        %v606 = vunpack.c.l.b16 %v229
        %v607 = vunpack.c.h.b16 %v229
        %v608 = vunpack.c.l.b16 %v230
        %v609 = vunpack.c.h.b16 %v230
        %v610 = vunpack.c.l.b16 %v231
        %v611 = vunpack.c.h.b16 %v231
        %v612 = vunpack.c.l.b16 %v232
        %v613 = vunpack.c.h.b16 %v232
        %v614 = vunpack.c.l.b16 %v233
        %v615 = vunpack.c.h.b16 %v233
        %v616 = vunpack.c.l.b16 %v234
        %v617 = vunpack.c.h.b16 %v234
        %v618 = vunpack.c.l.b16 %v235
        %v619 = vunpack.c.h.b16 %v235
        %v620 = vunpack.c.l.b16 %v236
        %v621 = vunpack.c.h.b16 %v236
        %v622 = vunpack.c.l.b16 %v237
        %v623 = vunpack.c.h.b16 %v237
        %v624 = vunpack.c.l.b16 %v238
        %v625 = vunpack.c.h.b16 %v238
        %v626 = vunpack.c.l.b16 %v239
        %v627 = vunpack.c.h.b16 %v239
        %v628 = vunpack.c.l.b16 %v240
        %v629 = vunpack.c.h.b16 %v240
        %v630 = vunpack.c.l.b16 %v241
        %v631 = vunpack.c.h.b16 %v241
        %v632 = vunpack.c.l.b16 %v242
        %v633 = vunpack.c.h.b16 %v242
        %v634 = vunpack.c.l.b16 %v243
        %v635 = vunpack.c.h.b16 %v243
        %v636 = vunpack.c.l.b16 %v244
        %v637 = vunpack.c.h.b16 %v244
        %v638 = vunpack.c.l.b16 %v245
        %v639 = vunpack.c.h.b16 %v245
        %v640 = vunpack.c.l.b16 %v246
        %v641 = vunpack.c.h.b16 %v246
        %v642 = vunpack.c.l.b16 %v247
        %v643 = vunpack.c.h.b16 %v247
        %v644 = vunpack.c.l.b16 %v248
        %v645 = vunpack.c.h.b16 %v248
        %v646 = vunpack.c.l.b16 %v249
        %v647 = vunpack.c.h.b16 %v249
        %v648 = vunpack.c.l.b16 %v250
        %v649 = vunpack.c.h.b16 %v250
        %v650 = vunpack.c.l.b16 %v251
        %v651 = vunpack.c.h.b16 %v251
        %v652 = vunpack.c.l.b16 %v252
        %v653 = vunpack.c.h.b16 %v252
        %v654 = vunpack.c.l.b16 %v253
        %v655 = vunpack.c.h.b16 %v253
        %v656 = vunpack.c.l.b16 %v254
        %v657 = vunpack.c.h.b16 %v254
        %v658 = vunpack.c.l.b16 %v255
        %v659 = vunpack.c.h.b16 %v255
        %v660 = vunpack.c.l.b16 %v256
        %v661 = vunpack.c.h.b16 %v256
        %v662 = vunpack.c.l.b16 %v257
        %v663 = vunpack.c.h.b16 %v257
        %v664 = vunpack.c.l.b16 %v258
        %v665 = vunpack.c.h.b16 %v258
        %v666 = vunpack.c.l.b16 %v259
        %v667 = vunpack.c.h.b16 %v259
        %v668 = vunpack.c.l.b16 %v260
        %v669 = vunpack.c.h.b16 %v260
        %v670 = vunpack.c.l.b16 %v261
        %v671 = vunpack.c.h.b16 %v261
        %v672 = vunpack.c.l.b16 %v262
        %v673 = vunpack.c.h.b16 %v262
        %v674 = vunpack.c.l.b16 %v263
        %v675 = vunpack.c.h.b16 %v263
        %v676 = vunpack.c.l.b16 %v264
        %v677 = vunpack.c.h.b16 %v264
        %v678 = vunpack.c.l.b16 %v265
        %v679 = vunpack.c.h.b16 %v265
        %v680 = vunpack.c.l.b16 %v266
        %v681 = vunpack.c.h.b16 %v266
        %v682 = vunpack.c.l.b16 %v267
        %v683 = vunpack.c.h.b16 %v267
        %v684 = vunpack.c.l.b16 %v268
        %v685 = vunpack.c.h.b16 %v268
        %v686 = vunpack.c.l.b16 %v269
        %v687 = vunpack.c.h.b16 %v269
        %v688 = vunpack.c.l.b16 %v270
        %v689 = vunpack.c.h.b16 %v270
        %v690 = vunpack.c.l.b16 %v271
        %v691 = vunpack.c.h.b16 %v271
        %v692 = vunpack.c.l.b16 %v272
        %v693 = vunpack.c.h.b16 %v272
        %v694 = vunpack.c.l.b16 %v273
        %v695 = vunpack.c.h.b16 %v273
        %v696 = vunpack.c.l.b16 %v274
        %v697 = vunpack.c.h.b16 %v274
        %v698 = vunpack.c.l.b16 %v275
        %v699 = vunpack.c.h.b16 %v275
        %v700 = vunpack.c.l.b16 %v276
        %v701 = vunpack.c.h.b16 %v276
        %v702 = vunpack.c.l.b16 %v277
        %v703 = vunpack.c.h.b16 %v277
        %v704 = vunpack.c.l.b16 %v278
        %v705 = vunpack.c.h.b16 %v278
        %v706 = vunpack.c.l.b16 %v279
        %v707 = vunpack.c.h.b16 %v279
        %v708 = vunpack.c.l.b16 %v280
        %v709 = vunpack.c.h.b16 %v280
        %v710 = vunpack.c.l.b16 %v281
        %v711 = vunpack.c.h.b16 %v281
        %v712 = vunpack.c.l.b16 %v282
        %v713 = vunpack.c.h.b16 %v282
        %v714 = vunpack.c.l.b16 %v283
        %v715 = vunpack.c.h.b16 %v283
        %v716 = vunpack.c.l.b16 %v284
        %v717 = vunpack.c.h.b16 %v284
        %v718 = vunpack.c.l.b16 %v285
        %v719 = vunpack.c.h.b16 %v285
        %v720 = vunpack.c.l.b16 %v286
        %v721 = vunpack.c.h.b16 %v286
        %v722 = vunpack.c.l.b16 %v287
        %v723 = vunpack.c.h.b16 %v287
        %v724 = vunpack.c.l.b16 %v288
        %v725 = vunpack.c.h.b16 %v288
        %v726 = vunpack.c.l.b16 %v289
        %v727 = vunpack.c.h.b16 %v289
        %v728 = vunpack.c.l.b16 %v290
        %v729 = vunpack.c.h.b16 %v290
        %v730 = vunpack.c.l.b16 %v291
        %v731 = vunpack.c.h.b16 %v291
        %v732 = vunpack.c.l.b16 %v292
        %v733 = vunpack.c.h.b16 %v292
        %v734 = vunpack.c.l.b16 %v293
        %v735 = vunpack.c.h.b16 %v293
        %v736 = vunpack.c.l.b16 %v294
        %v737 = vunpack.c.h.b16 %v294
        %v738 = vunpack.c.l.b16 %v295
        %v739 = vunpack.c.h.b16 %v295
        %v740 = vunpack.c.l.b16 %v296
        %v741 = vunpack.c.h.b16 %v296
        %v742 = vunpack.c.l.b16 %v297
        %v743 = vunpack.c.h.b16 %v297
        %v744 = vunpack.c.l.b16 %v298
        %v745 = vunpack.c.h.b16 %v298
        %v746 = vunpack.c.l.b16 %v299
        %v747 = vunpack.c.h.b16 %v299
        %v748 = vunpack.c.l.b16 %v300
        %v749 = vunpack.c.h.b16 %v300
        %v750 = vunpack.c.l.b16 %v301
        %v751 = vunpack.c.h.b16 %v301
        %v752 = vunpack.c.l.b16 %v302
        %v753 = vunpack.c.h.b16 %v302
        %v754 = vunpack.c.l.b16 %v303
        %v755 = vunpack.c.h.b16 %v303
        %v756 = vunpack.c.l.b16 %v304
        %v757 = vunpack.c.h.b16 %v304
        %v758 = vunpack.c.l.b16 %v305
        %v759 = vunpack.c.h.b16 %v305
        %v760 = vunpack.c.l.b16 %v306
        %v761 = vunpack.c.h.b16 %v306
        %v762 = vunpack.c.l.b16 %v307
        %v763 = vunpack.c.h.b16 %v307
        %v764 = vunpack.c.l.b16 %v308
        %v765 = vunpack.c.h.b16 %v308
        %v766 = vunpack.c.l.b16 %v309
        %v767 = vunpack.c.h.b16 %v309
        %v768 = vunpack.c.l.b16 %v310
        %v769 = vunpack.c.h.b16 %v310
        %v770 = vunpack.c.l.b16 %v311
        %v771 = vunpack.c.h.b16 %v311
        %v772 = vunpack.c.l.b16 %v312
        %v773 = vunpack.c.h.b16 %v312
        %v774 = vunpack.c.l.b16 %v313
        %v775 = vunpack.c.h.b16 %v313
        %v776 = vunpack.c.l.b16 %v314
        %v777 = vunpack.c.h.b16 %v314
        %v778 = vpack.c.b16 %v544, %v538
        %v779 = vpack.c.b16 %v545, %v539
        %v780 = vpack.c.b16 %v546, %v540
        %v781 = vpack.c.b16 %v547, %v541
        %v782 = vpack.c.b16 %v548, %v542
        %v783 = vpack.c.b16 %v549, %v543
        %v784 = vpack.c.b16 %v556, %v550
        %v785 = vpack.c.b16 %v557, %v551
        %v786 = vpack.c.b16 %v558, %v552
        %v787 = vpack.c.b16 %v559, %v553
        %v788 = vpack.c.b16 %v560, %v554
        %v789 = vpack.c.b16 %v561, %v555
        %v790 = vpack.c.b16 %v568, %v562
        %v791 = vpack.c.b16 %v569, %v563
        %v792 = vpack.c.b16 %v570, %v564
        %v793 = vpack.c.b16 %v571, %v565
        %v794 = vpack.c.b16 %v572, %v566
        %v795 = vpack.c.b16 %v573, %v567
        %v796 = vpack.c.b16 %v580, %v574
        %v797 = vpack.c.b16 %v581, %v575
        %v798 = vpack.c.b16 %v582, %v576
        %v799 = vpack.c.b16 %v583, %v577
        %v800 = vpack.c.b16 %v584, %v578
        %v801 = vpack.c.b16 %v585, %v579
        %v802 = vpack.c.b16 %v592, %v586
        %v803 = vpack.c.b16 %v593, %v587
        %v804 = vpack.c.b16 %v594, %v588
        %v805 = vpack.c.b16 %v595, %v589
        %v806 = vpack.c.b16 %v596, %v590
        %v807 = vpack.c.b16 %v597, %v591
        %v808 = vpack.c.b16 %v604, %v598
        %v809 = vpack.c.b16 %v605, %v599
        %v810 = vpack.c.b16 %v606, %v600
        %v811 = vpack.c.b16 %v607, %v601
        %v812 = vpack.c.b16 %v608, %v602
        %v813 = vpack.c.b16 %v609, %v603
        %v814 = vpack.c.b16 %v616, %v610
        %v815 = vpack.c.b16 %v617, %v611
        %v816 = vpack.c.b16 %v618, %v612
        %v817 = vpack.c.b16 %v619, %v613
        %v818 = vpack.c.b16 %v620, %v614
        %v819 = vpack.c.b16 %v621, %v615
        %v820 = vpack.c.b16 %v628, %v622
        %v821 = vpack.c.b16 %v629, %v623
        %v822 = vpack.c.b16 %v630, %v624
        %v823 = vpack.c.b16 %v631, %v625
        %v824 = vpack.c.b16 %v632, %v626
        %v825 = vpack.c.b16 %v633, %v627
        %v826 = vpack.c.b16 %v640, %v634
        %v827 = vpack.c.b16 %v641, %v635
        %v828 = vpack.c.b16 %v642, %v636
        %v829 = vpack.c.b16 %v643, %v637
        %v830 = vpack.c.b16 %v644, %v638
        %v831 = vpack.c.b16 %v645, %v639
        %v832 = vpack.c.b16 %v652, %v646
        %v833 = vpack.c.b16 %v653, %v647
        %v834 = vpack.c.b16 %v654, %v648
        %v835 = vpack.c.b16 %v655, %v649
        %v836 = vpack.c.b16 %v656, %v650
        %v837 = vpack.c.b16 %v657, %v651
        %v838 = vpack.c.b16 %v664, %v658
        %v839 = vpack.c.b16 %v665, %v659
        %v840 = vpack.c.b16 %v666, %v660
        %v841 = vpack.c.b16 %v667, %v661
        %v842 = vpack.c.b16 %v668, %v662
        %v843 = vpack.c.b16 %v669, %v663
        %v844 = vpack.c.b16 %v676, %v670
        %v845 = vpack.c.b16 %v677, %v671
        %v846 = vpack.c.b16 %v678, %v672
        %v847 = vpack.c.b16 %v679, %v673
        %v848 = vpack.c.b16 %v680, %v674
        %v849 = vpack.c.b16 %v681, %v675
        %v850 = vpack.c.b16 %v688, %v682
        %v851 = vpack.c.b16 %v689, %v683
        %v852 = vpack.c.b16 %v690, %v684
        %v853 = vpack.c.b16 %v691, %v685
        %v854 = vpack.c.b16 %v692, %v686
        %v855 = vpack.c.b16 %v693, %v687
        %v856 = vpack.c.b16 %v700, %v694
        %v857 = vpack.c.b16 %v701, %v695
        %v858 = vpack.c.b16 %v702, %v696
        %v859 = vpack.c.b16 %v703, %v697
        %v860 = vpack.c.b16 %v704, %v698
        %v861 = vpack.c.b16 %v705, %v699
        %v862 = vpack.c.b16 %v712, %v706
        %v863 = vpack.c.b16 %v713, %v707
        %v864 = vpack.c.b16 %v714, %v708
        %v865 = vpack.c.b16 %v715, %v709
        %v866 = vpack.c.b16 %v716, %v710
        %v867 = vpack.c.b16 %v717, %v711
        %v868 = vpack.c.b16 %v724, %v718
        %v869 = vpack.c.b16 %v725, %v719
        %v870 = vpack.c.b16 %v726, %v720
        %v871 = vpack.c.b16 %v727, %v721
        %v872 = vpack.c.b16 %v728, %v722
        %v873 = vpack.c.b16 %v729, %v723
        %v874 = vpack.c.b16 %v736, %v730
        %v875 = vpack.c.b16 %v737, %v731
        %v876 = vpack.c.b16 %v738, %v732
        %v877 = vpack.c.b16 %v739, %v733
        %v878 = vpack.c.b16 %v740, %v734
        %v879 = vpack.c.b16 %v741, %v735
        %v880 = vpack.c.b16 %v748, %v742
        %v881 = vpack.c.b16 %v749, %v743
        %v882 = vpack.c.b16 %v750, %v744
        %v883 = vpack.c.b16 %v751, %v745
        %v884 = vpack.c.b16 %v752, %v746
        %v885 = vpack.c.b16 %v753, %v747
        %v886 = vpack.c.b16 %v760, %v754
        %v887 = vpack.c.b16 %v761, %v755
        %v888 = vpack.c.b16 %v762, %v756
        %v889 = vpack.c.b16 %v763, %v757
        %v890 = vpack.c.b16 %v764, %v758
        %v891 = vpack.c.b16 %v765, %v759
        %v892 = vpack.c.b16 %v772, %v766
        %v893 = vpack.c.b16 %v773, %v767
        %v894 = vpack.c.b16 %v774, %v768
        %v895 = vpack.c.b16 %v775, %v769
        %v896 = vpack.c.b16 %v776, %v770
        %v897 = vpack.c.b16 %v777, %v771
        %v1114 = vunpack.c.l.b16 %v315
        %v1115 = vunpack.c.l.b16 %v316
        %v1116 = vunpack.c.l.b16 %v317
        %v1117 = vunpack.c.l.b16 %v318
        %v1118 = vunpack.c.l.b16 %v319
        %v1119 = vunpack.c.l.b16 %v320
        %v1120 = vunpack.c.l.b16 %v321
        %v1121 = vunpack.c.l.b16 %v322
        %v1122 = vunpack.c.l.b16 %v323
        %v1123 = vunpack.c.l.b16 %v324
        %v1124 = vunpack.c.l.b16 %v325
        %v1125 = vunpack.c.l.b16 %v326
        %v1126 = vunpack.c.l.b16 %v327
        %v1127 = vunpack.c.l.b16 %v328
        %v1128 = vunpack.c.l.b16 %v329
        %v1129 = vunpack.c.l.b16 %v330
        %v1130 = vunpack.c.l.b16 %v331
        %v1131 = vunpack.c.l.b16 %v332
        %v1132 = vunpack.c.l.b16 %v333
        %v1133 = vunpack.c.l.b16 %v334
        %v1134 = vunpack.c.l.b16 %v335
        %v1135 = vunpack.c.l.b16 %v336
        %v1136 = vunpack.c.l.b16 %v337
        %v1137 = vunpack.c.l.b16 %v338
        %v1138 = vunpack.c.l.b16 %v339
        %v1139 = vunpack.c.l.b16 %v340
        %v1140 = vunpack.c.l.b16 %v341
        %v1141 = vunpack.c.l.b16 %v342
        %v1142 = vunpack.c.l.b16 %v343
        %v1143 = vunpack.c.l.b16 %v344
        %v1144 = vunpack.c.l.b16 %v345
        %v1145 = vunpack.c.l.b16 %v346
        %v1146 = vunpack.c.l.b16 %v347
        %v1147 = vunpack.c.l.b16 %v348
        %v1148 = vunpack.c.l.b16 %v349
        %v1149 = vunpack.c.l.b16 %v350
        %v1150 = vunpack.c.l.b16 %v351
        %v1151 = vunpack.c.l.b16 %v352
        %v1152 = vunpack.c.l.b16 %v353
        %v1153 = vunpack.c.l.b16 %v354
        %v1154 = vunpack.c.l.b16 %v355
        %v1155 = vunpack.c.l.b16 %v356
        %v1156 = vunpack.c.l.b16 %v357
        %v1157 = vunpack.c.l.b16 %v358
        %v1158 = vunpack.c.l.b16 %v359
        %v1159 = vunpack.c.l.b16 %v360
        %v1160 = vunpack.c.l.b16 %v361
        %v1161 = vunpack.c.l.b16 %v362
        %v1162 = vunpack.c.l.b16 %v363
        %v1163 = vunpack.c.l.b16 %v364
        %v1164 = vunpack.c.l.b16 %v365
        %v1165 = vunpack.c.l.b16 %v366
        %v1166 = vunpack.c.l.b16 %v367
        %v1167 = vunpack.c.l.b16 %v368
        %v1168 = vunpack.c.l.b16 %v369
        %v1169 = vunpack.c.l.b16 %v370
        %v1170 = vunpack.c.l.b16 %v371
        %v1171 = vunpack.c.l.b16 %v372
        %v1172 = vunpack.c.l.b16 %v373
        %v1173 = vunpack.c.l.b16 %v374
        %v1174 = vunpack.c.l.b16 %v375
        %v1175 = vunpack.c.l.b16 %v376
        %v1176 = vunpack.c.l.b16 %v377
        %v1177 = vunpack.c.l.b16 %v378
        %v1178 = vunpack.c.l.b16 %v379
        %v1179 = vunpack.c.l.b16 %v380
        %v1180 = vunpack.c.l.b16 %v381
        %v1181 = vunpack.c.l.b16 %v382
        %v1182 = vunpack.c.l.b16 %v383
        %v1183 = vunpack.c.l.b16 %v384
        %v1184 = vunpack.c.l.b16 %v385
        %v1185 = vunpack.c.l.b16 %v386
        %v1186 = vunpack.c.l.b16 %v387
        %v1187 = vunpack.c.l.b16 %v388
        %v1188 = vunpack.c.l.b16 %v389
        %v1189 = vunpack.c.l.b16 %v390
        %v1190 = vunpack.c.l.b16 %v391
        %v1191 = vunpack.c.l.b16 %v392
        %v1192 = vunpack.c.l.b16 %v393
        %v1193 = vunpack.c.l.b16 %v394
        %v1194 = vunpack.c.l.b16 %v395
        %v1195 = vunpack.c.l.b16 %v396
        %v1196 = vunpack.c.l.b16 %v397
        %v1197 = vunpack.c.l.b16 %v398
        %v1198 = vunpack.c.l.b16 %v399
        %v1199 = vunpack.c.l.b16 %v400
        %v1200 = vunpack.c.l.b16 %v401
        %v1201 = vunpack.c.l.b16 %v402
        %v1202 = vunpack.c.l.b16 %v403
        %v1203 = vunpack.c.l.b16 %v404
        %v1204 = vunpack.c.l.b16 %v405
        %v1205 = vunpack.c.l.b16 %v406
        %v1206 = vunpack.c.l.b16 %v407
        %v1207 = vunpack.c.l.b16 %v408
        %v1208 = vunpack.c.l.b16 %v409
        %v1209 = vunpack.c.l.b16 %v410
        %v1210 = vpack.c.b16 %v1115, %v1114
        %v1211 = vpack.c.b16 %v1117, %v1116
        %v1212 = vpack.c.b16 %v1119, %v1118
        %v1213 = vpack.c.b16 %v1121, %v1120
        %v1214 = vpack.c.b16 %v1123, %v1122
        %v1215 = vpack.c.b16 %v1125, %v1124
        %v1216 = vpack.c.b16 %v1127, %v1126
        %v1217 = vpack.c.b16 %v1129, %v1128
        %v1218 = vpack.c.b16 %v1131, %v1130
        %v1219 = vpack.c.b16 %v1133, %v1132
        %v1220 = vpack.c.b16 %v1135, %v1134
        %v1221 = vpack.c.b16 %v1137, %v1136
        %v1222 = vpack.c.b16 %v1139, %v1138
        %v1223 = vpack.c.b16 %v1141, %v1140
        %v1224 = vpack.c.b16 %v1143, %v1142
        %v1225 = vpack.c.b16 %v1145, %v1144
        %v1226 = vpack.c.b16 %v1147, %v1146
        %v1227 = vpack.c.b16 %v1149, %v1148
        %v1228 = vpack.c.b16 %v1151, %v1150
        %v1229 = vpack.c.b16 %v1153, %v1152
        %v1230 = vpack.c.b16 %v1155, %v1154
        %v1231 = vpack.c.b16 %v1157, %v1156
        %v1232 = vpack.c.b16 %v1159, %v1158
        %v1233 = vpack.c.b16 %v1161, %v1160
        %v1234 = vpack.c.b16 %v1163, %v1162
        %v1235 = vpack.c.b16 %v1165, %v1164
        %v1236 = vpack.c.b16 %v1167, %v1166
        %v1237 = vpack.c.b16 %v1169, %v1168
        %v1238 = vpack.c.b16 %v1171, %v1170
        %v1239 = vpack.c.b16 %v1173, %v1172
        %v1240 = vpack.c.b16 %v1175, %v1174
        %v1241 = vpack.c.b16 %v1177, %v1176
        %v1242 = vpack.c.b16 %v1179, %v1178
        %v1243 = vpack.c.b16 %v1181, %v1180
        %v1244 = vpack.c.b16 %v1183, %v1182
        %v1245 = vpack.c.b16 %v1185, %v1184
        %v1246 = vpack.c.b16 %v1187, %v1186
        %v1247 = vpack.c.b16 %v1189, %v1188
        %v1248 = vpack.c.b16 %v1191, %v1190
        %v1249 = vpack.c.b16 %v1193, %v1192
        %v1250 = vpack.c.b16 %v1195, %v1194
        %v1251 = vpack.c.b16 %v1197, %v1196
        %v1252 = vpack.c.b16 %v1199, %v1198
        %v1253 = vpack.c.b16 %v1201, %v1200
        %v1254 = vpack.c.b16 %v1203, %v1202
        %v1255 = vpack.c.b16 %v1205, %v1204
        %v1256 = vpack.c.b16 %v1207, %v1206
        %v1257 = vpack.c.b16 %v1209, %v1208
        %1306 = vmatprep.subr.bf16.mxu0 0
        %1307 = vmatpush1.bf16.msra.mxu0 %v1217
        %1308 = vmatprep.subr.bf16.mxu0 0
        %1309 = vmatpush1.bf16.msra.mxu0 %v1216
        %1310 = vmatprep.subr.bf16.mxu0 0
        %1311 = vmatpush1.bf16.msra.mxu0 %v1215
        %1312 = vmatprep.subr.bf16.mxu0 0
        %1313 = vmatpush1.bf16.msra.mxu0 %v1214
        %1314 = vmatprep.subr.bf16.mxu0 0
        %1315 = vmatpush1.bf16.msra.mxu0 %v1213
        %1316 = vmatprep.subr.bf16.mxu0 0
        %1317 = vmatpush1.bf16.msra.mxu0 %v1212
        %1318 = vmatprep.subr.bf16.mxu0 0
        %1319 = vmatpush1.bf16.msra.mxu0 %v1211
        %1320 = vmatprep.subr.bf16.mxu0 0
        %1321 = vmatpush1.bf16.msra.mxu0 %v1210
        %1322 = vmatprep.subr.bf16.mxu0 0
        %1323 = vmatpush2.bf16.msra.mxu0 %v1225
        %1324 = vmatprep.subr.bf16.mxu0 0
        %1325 = vmatpush2.bf16.msra.mxu0 %v1224
        %1326 = vmatprep.subr.bf16.mxu0 0
        %1327 = vmatpush2.bf16.msra.mxu0 %v1223
        %1328 = vmatprep.subr.bf16.mxu0 0
        %1329 = vmatpush2.bf16.msra.mxu0 %v1222
        %1330 = vmatprep.subr.bf16.mxu0 0
        %1331 = vmatpush2.bf16.msra.mxu0 %v1221
        %1332 = vmatprep.subr.bf16.mxu0 0
        %1333 = vmatpush2.bf16.msra.mxu0 %v1220
        %1334 = vmatprep.subr.bf16.mxu0 0
        %1335 = vmatpush2.bf16.msra.mxu0 %v1219
        %1336 = vmatprep.subr.bf16.mxu0 0
        %1337 = vmatpush2.bf16.msra.mxu0 %v1218
        %1338 = vmatprep.mubr.bf16.mxu0 %v779
        %1339 = vmatmul.mubr.bf16.gmra.mxu0 %v778
        %v1340 = vpop.f32.mrf.mxu0
        %v1341 = vadd.f32 %v416, %v1340
        %v1342 = vpop.f32.mrf.mxu0
        %v1343 = vpop.f32.mrf.mxu0
        %v1344 = vadd.f32 %v416, %v1343
        %v1345 = vpop.f32.mrf.mxu0
        %1346 = vmatprep.mubr.bf16.mxu0 %v785
        %1347 = vmatmul.mubr.bf16.gmra.mxu0 %v784
        %v1348 = vpop.f32.mrf.mxu0
        %v1349 = vadd.f32 %v416, %v1348
        %v1350 = vpop.f32.mrf.mxu0
        %v1351 = vpop.f32.mrf.mxu0
        %v1352 = vadd.f32 %v416, %v1351
        %v1353 = vpop.f32.mrf.mxu0
        %1354 = vmatprep.mubr.bf16.mxu0 %v791
        %1355 = vmatmul.mubr.bf16.gmra.mxu0 %v790
        %v1356 = vpop.f32.mrf.mxu0
        %v1357 = vadd.f32 %v416, %v1356
        %v1358 = vpop.f32.mrf.mxu0
        %v1359 = vpop.f32.mrf.mxu0
        %v1360 = vadd.f32 %v416, %v1359
        %v1361 = vpop.f32.mrf.mxu0
        %1362 = vmatprep.mubr.bf16.mxu0 %v797
        %1363 = vmatmul.mubr.bf16.gmra.mxu0 %v796
        %v1364 = vpop.f32.mrf.mxu0
        %v1365 = vadd.f32 %v416, %v1364
        %v1366 = vpop.f32.mrf.mxu0
        %v1367 = vpop.f32.mrf.mxu0
        %v1368 = vadd.f32 %v416, %v1367
        %v1369 = vpop.f32.mrf.mxu0
        %1370 = vmatprep.mubr.bf16.mxu0 %v803
        %1371 = vmatmul.mubr.bf16.gmra.mxu0 %v802
        %v1372 = vpop.f32.mrf.mxu0
        %v1373 = vadd.f32 %v416, %v1372
        %v1374 = vpop.f32.mrf.mxu0
        %v1375 = vpop.f32.mrf.mxu0
        %v1376 = vadd.f32 %v416, %v1375
        %v1377 = vpop.f32.mrf.mxu0
        %1378 = vmatprep.mubr.bf16.mxu0 %v809
        %1379 = vmatmul.mubr.bf16.gmra.mxu0 %v808
        %v1380 = vpop.f32.mrf.mxu0
        %v1381 = vadd.f32 %v416, %v1380
        %v1382 = vpop.f32.mrf.mxu0
        %v1383 = vpop.f32.mrf.mxu0
        %v1384 = vadd.f32 %v416, %v1383
        %v1385 = vpop.f32.mrf.mxu0
        %1386 = vmatprep.mubr.bf16.mxu0 %v815
        %1387 = vmatmul.mubr.bf16.gmra.mxu0 %v814
        %v1388 = vpop.f32.mrf.mxu0
        %v1389 = vadd.f32 %v416, %v1388
        %v1390 = vpop.f32.mrf.mxu0
        %v1391 = vpop.f32.mrf.mxu0
        %v1392 = vadd.f32 %v416, %v1391
        %v1393 = vpop.f32.mrf.mxu0
        %1394 = vmatprep.mubr.bf16.mxu0 %v821
        %1395 = vmatmul.mubr.bf16.gmra.mxu0 %v820
        %v1396 = vpop.f32.mrf.mxu0
        %v1397 = vadd.f32 %v416, %v1396
        %v1398 = vpop.f32.mrf.mxu0
        %v1399 = vpop.f32.mrf.mxu0
        %v1400 = vadd.f32 %v416, %v1399
        %v1401 = vpop.f32.mrf.mxu0
        %1402 = vmatprep.mubr.bf16.mxu0 %v827
        %1403 = vmatmul.mubr.bf16.gmra.mxu0 %v826
        %v1404 = vpop.f32.mrf.mxu0
        %v1405 = vadd.f32 %v416, %v1404
        %v1406 = vpop.f32.mrf.mxu0
        %v1407 = vpop.f32.mrf.mxu0
        %v1408 = vadd.f32 %v416, %v1407
        %v1409 = vpop.f32.mrf.mxu0
        %1410 = vmatprep.mubr.bf16.mxu0 %v833
        %1411 = vmatmul.mubr.bf16.gmra.mxu0 %v832
        %v1412 = vpop.f32.mrf.mxu0
        %v1413 = vadd.f32 %v416, %v1412
        %v1414 = vpop.f32.mrf.mxu0
        %v1415 = vpop.f32.mrf.mxu0
        %v1416 = vadd.f32 %v416, %v1415
        %v1417 = vpop.f32.mrf.mxu0
        %1418 = vmatprep.mubr.bf16.mxu0 %v839
        %1419 = vmatmul.mubr.bf16.gmra.mxu0 %v838
        %v1420 = vpop.f32.mrf.mxu0
        %v1421 = vadd.f32 %v416, %v1420
        %v1422 = vpop.f32.mrf.mxu0
        %v1423 = vpop.f32.mrf.mxu0
        %v1424 = vadd.f32 %v416, %v1423
        %v1425 = vpop.f32.mrf.mxu0
        %1426 = vmatprep.mubr.bf16.mxu0 %v845
        %1427 = vmatmul.mubr.bf16.gmra.mxu0 %v844
        %v1428 = vpop.f32.mrf.mxu0
        %v1429 = vadd.f32 %v416, %v1428
        %v1430 = vpop.f32.mrf.mxu0
        %v1431 = vpop.f32.mrf.mxu0
        %v1432 = vadd.f32 %v416, %v1431
        %v1433 = vpop.f32.mrf.mxu0
        %1434 = vmatprep.mubr.bf16.mxu0 %v851
        %1435 = vmatmul.mubr.bf16.gmra.mxu0 %v850
        %v1436 = vpop.f32.mrf.mxu0
        %v1437 = vadd.f32 %v416, %v1436
        %v1438 = vpop.f32.mrf.mxu0
        %v1439 = vpop.f32.mrf.mxu0
        %v1440 = vadd.f32 %v416, %v1439
        %v1441 = vpop.f32.mrf.mxu0
        %1442 = vmatprep.mubr.bf16.mxu0 %v857
        %1443 = vmatmul.mubr.bf16.gmra.mxu0 %v856
        %v1444 = vpop.f32.mrf.mxu0
        %v1445 = vadd.f32 %v416, %v1444
        %v1446 = vpop.f32.mrf.mxu0
        %v1447 = vpop.f32.mrf.mxu0
        %v1448 = vadd.f32 %v416, %v1447
        %v1449 = vpop.f32.mrf.mxu0
        %1450 = vmatprep.mubr.bf16.mxu0 %v863
        %1451 = vmatmul.mubr.bf16.gmra.mxu0 %v862
        %v1452 = vpop.f32.mrf.mxu0
        %v1453 = vadd.f32 %v416, %v1452
        %v1454 = vpop.f32.mrf.mxu0
        %v1455 = vpop.f32.mrf.mxu0
        %v1456 = vadd.f32 %v416, %v1455
        %v1457 = vpop.f32.mrf.mxu0
        %1458 = vmatprep.mubr.bf16.mxu0 %v869
        %1459 = vmatmul.mubr.bf16.gmra.mxu0 %v868
        %v1460 = vpop.f32.mrf.mxu0
        %v1461 = vadd.f32 %v416, %v1460
        %v1462 = vpop.f32.mrf.mxu0
        %v1463 = vpop.f32.mrf.mxu0
        %v1464 = vadd.f32 %v416, %v1463
        %v1465 = vpop.f32.mrf.mxu0
        %1466 = vmatprep.mubr.bf16.mxu0 %v875
        %1467 = vmatmul.mubr.bf16.gmra.mxu0 %v874
        %v1468 = vpop.f32.mrf.mxu0
        %v1469 = vadd.f32 %v416, %v1468
        %v1470 = vpop.f32.mrf.mxu0
        %v1471 = vpop.f32.mrf.mxu0
        %v1472 = vadd.f32 %v416, %v1471
        %v1473 = vpop.f32.mrf.mxu0
        %1474 = vmatprep.mubr.bf16.mxu0 %v881
        %1475 = vmatmul.mubr.bf16.gmra.mxu0 %v880
        %v1476 = vpop.f32.mrf.mxu0
        %v1477 = vadd.f32 %v416, %v1476
        %v1478 = vpop.f32.mrf.mxu0
        %v1479 = vpop.f32.mrf.mxu0
        %v1480 = vadd.f32 %v416, %v1479
        %v1481 = vpop.f32.mrf.mxu0
        %1482 = vmatprep.mubr.bf16.mxu0 %v887
        %1483 = vmatmul.mubr.bf16.gmra.mxu0 %v886
        %v1484 = vpop.f32.mrf.mxu0
        %v1485 = vadd.f32 %v416, %v1484
        %v1486 = vpop.f32.mrf.mxu0
        %v1487 = vpop.f32.mrf.mxu0
        %v1488 = vadd.f32 %v416, %v1487
        %v1489 = vpop.f32.mrf.mxu0
        %1490 = vmatprep.mubr.bf16.mxu0 %v893
        %1491 = vmatmul.mubr.bf16.gmra.mxu0 %v892
        %v1492 = vpop.f32.mrf.mxu0
        %v1493 = vadd.f32 %v416, %v1492
        %v1494 = vpop.f32.mrf.mxu0
        %v1495 = vpop.f32.mrf.mxu0
        %v1496 = vadd.f32 %v416, %v1495
        %v1497 = vpop.f32.mrf.mxu0
        %1498 = vdwg.mxu0
        %1499 = vmatprep.subr.bf16.mxu0 0
        %1500 = vmatpush1.bf16.msra.mxu0 %v1233
        %1501 = vmatprep.subr.bf16.mxu0 0
        %1502 = vmatpush1.bf16.msra.mxu0 %v1232
        %1503 = vmatprep.subr.bf16.mxu0 0
        %1504 = vmatpush1.bf16.msra.mxu0 %v1231
        %1505 = vmatprep.subr.bf16.mxu0 0
        %1506 = vmatpush1.bf16.msra.mxu0 %v1230
        %1507 = vmatprep.subr.bf16.mxu0 0
        %1508 = vmatpush1.bf16.msra.mxu0 %v1229
        %1509 = vmatprep.subr.bf16.mxu0 0
        %1510 = vmatpush1.bf16.msra.mxu0 %v1228
        %1511 = vmatprep.subr.bf16.mxu0 0
        %1512 = vmatpush1.bf16.msra.mxu0 %v1227
        %1513 = vmatprep.subr.bf16.mxu0 0
        %1514 = vmatpush1.bf16.msra.mxu0 %v1226
        %1515 = vmatprep.subr.bf16.mxu0 0
        %1516 = vmatpush2.bf16.msra.mxu0 %v1241
        %1517 = vmatprep.subr.bf16.mxu0 0
        %1518 = vmatpush2.bf16.msra.mxu0 %v1240
        %1519 = vmatprep.subr.bf16.mxu0 0
        %1520 = vmatpush2.bf16.msra.mxu0 %v1239
        %1521 = vmatprep.subr.bf16.mxu0 0
        %1522 = vmatpush2.bf16.msra.mxu0 %v1238
        %1523 = vmatprep.subr.bf16.mxu0 0
        %1524 = vmatpush2.bf16.msra.mxu0 %v1237
        %1525 = vmatprep.subr.bf16.mxu0 0
        %1526 = vmatpush2.bf16.msra.mxu0 %v1236
        %1527 = vmatprep.subr.bf16.mxu0 0
        %1528 = vmatpush2.bf16.msra.mxu0 %v1235
        %1529 = vmatprep.subr.bf16.mxu0 0
        %1530 = vmatpush2.bf16.msra.mxu0 %v1234
        %1531 = vmatprep.mubr.bf16.mxu0 %v781
        %1532 = vmatmul.mubr.bf16.gmra.mxu0 %v780
        %v1533 = vpop.f32.mrf.mxu0
        %v1534 = vadd.f32 %v1341, %v1533
        %v1535 = vpop.f32.mrf.mxu0
        %v1536 = vpop.f32.mrf.mxu0
        %v1537 = vadd.f32 %v1344, %v1536
        %v1538 = vpop.f32.mrf.mxu0
        %1539 = vmatprep.mubr.bf16.mxu0 %v787
        %1540 = vmatmul.mubr.bf16.gmra.mxu0 %v786
        %v1541 = vpop.f32.mrf.mxu0
        %v1542 = vadd.f32 %v1349, %v1541
        %v1543 = vpop.f32.mrf.mxu0
        %v1544 = vpop.f32.mrf.mxu0
        %v1545 = vadd.f32 %v1352, %v1544
        %v1546 = vpop.f32.mrf.mxu0
        %1547 = vmatprep.mubr.bf16.mxu0 %v793
        %1548 = vmatmul.mubr.bf16.gmra.mxu0 %v792
        %v1549 = vpop.f32.mrf.mxu0
        %v1550 = vadd.f32 %v1357, %v1549
        %v1551 = vpop.f32.mrf.mxu0
        %v1552 = vpop.f32.mrf.mxu0
        %v1553 = vadd.f32 %v1360, %v1552
        %v1554 = vpop.f32.mrf.mxu0
        %1555 = vmatprep.mubr.bf16.mxu0 %v799
        %1556 = vmatmul.mubr.bf16.gmra.mxu0 %v798
        %v1557 = vpop.f32.mrf.mxu0
        %v1558 = vadd.f32 %v1365, %v1557
        %v1559 = vpop.f32.mrf.mxu0
        %v1560 = vpop.f32.mrf.mxu0
        %v1561 = vadd.f32 %v1368, %v1560
        %v1562 = vpop.f32.mrf.mxu0
        %1563 = vmatprep.mubr.bf16.mxu0 %v805
        %1564 = vmatmul.mubr.bf16.gmra.mxu0 %v804
        %v1565 = vpop.f32.mrf.mxu0
        %v1566 = vadd.f32 %v1373, %v1565
        %v1567 = vpop.f32.mrf.mxu0
        %v1568 = vpop.f32.mrf.mxu0
        %v1569 = vadd.f32 %v1376, %v1568
        %v1570 = vpop.f32.mrf.mxu0
        %1571 = vmatprep.mubr.bf16.mxu0 %v811
        %1572 = vmatmul.mubr.bf16.gmra.mxu0 %v810
        %v1573 = vpop.f32.mrf.mxu0
        %v1574 = vadd.f32 %v1381, %v1573
        %v1575 = vpop.f32.mrf.mxu0
        %v1576 = vpop.f32.mrf.mxu0
        %v1577 = vadd.f32 %v1384, %v1576
        %v1578 = vpop.f32.mrf.mxu0
        %1579 = vmatprep.mubr.bf16.mxu0 %v817
        %1580 = vmatmul.mubr.bf16.gmra.mxu0 %v816
        %v1581 = vpop.f32.mrf.mxu0
        %v1582 = vadd.f32 %v1389, %v1581
        %v1583 = vpop.f32.mrf.mxu0
        %v1584 = vpop.f32.mrf.mxu0
        %v1585 = vadd.f32 %v1392, %v1584
        %v1586 = vpop.f32.mrf.mxu0
        %1587 = vmatprep.mubr.bf16.mxu0 %v823
        %1588 = vmatmul.mubr.bf16.gmra.mxu0 %v822
        %v1589 = vpop.f32.mrf.mxu0
        %v1590 = vadd.f32 %v1397, %v1589
        %v1591 = vpop.f32.mrf.mxu0
        %v1592 = vpop.f32.mrf.mxu0
        %v1593 = vadd.f32 %v1400, %v1592
        %v1594 = vpop.f32.mrf.mxu0
        %1595 = vmatprep.mubr.bf16.mxu0 %v829
        %1596 = vmatmul.mubr.bf16.gmra.mxu0 %v828
        %v1597 = vpop.f32.mrf.mxu0
        %v1598 = vadd.f32 %v1405, %v1597
        %v1599 = vpop.f32.mrf.mxu0
        %v1600 = vpop.f32.mrf.mxu0
        %v1601 = vadd.f32 %v1408, %v1600
        %v1602 = vpop.f32.mrf.mxu0
        %1603 = vmatprep.mubr.bf16.mxu0 %v835
        %1604 = vmatmul.mubr.bf16.gmra.mxu0 %v834
        %v1605 = vpop.f32.mrf.mxu0
        %v1606 = vadd.f32 %v1413, %v1605
        %v1607 = vpop.f32.mrf.mxu0
        %v1608 = vpop.f32.mrf.mxu0
        %v1609 = vadd.f32 %v1416, %v1608
        %v1610 = vpop.f32.mrf.mxu0
        %1611 = vmatprep.mubr.bf16.mxu0 %v841
        %1612 = vmatmul.mubr.bf16.gmra.mxu0 %v840
        %v1613 = vpop.f32.mrf.mxu0
        %v1614 = vadd.f32 %v1421, %v1613
        %v1615 = vpop.f32.mrf.mxu0
        %v1616 = vpop.f32.mrf.mxu0
        %v1617 = vadd.f32 %v1424, %v1616
        %v1618 = vpop.f32.mrf.mxu0
        %1619 = vmatprep.mubr.bf16.mxu0 %v847
        %1620 = vmatmul.mubr.bf16.gmra.mxu0 %v846
        %v1621 = vpop.f32.mrf.mxu0
        %v1622 = vadd.f32 %v1429, %v1621
        %v1623 = vpop.f32.mrf.mxu0
        %v1624 = vpop.f32.mrf.mxu0
        %v1625 = vadd.f32 %v1432, %v1624
        %v1626 = vpop.f32.mrf.mxu0
        %1627 = vmatprep.mubr.bf16.mxu0 %v853
        %1628 = vmatmul.mubr.bf16.gmra.mxu0 %v852
        %v1629 = vpop.f32.mrf.mxu0
        %v1630 = vadd.f32 %v1437, %v1629
        %v1631 = vpop.f32.mrf.mxu0
        %v1632 = vpop.f32.mrf.mxu0
        %v1633 = vadd.f32 %v1440, %v1632
        %v1634 = vpop.f32.mrf.mxu0
        %1635 = vmatprep.mubr.bf16.mxu0 %v859
        %1636 = vmatmul.mubr.bf16.gmra.mxu0 %v858
        %v1637 = vpop.f32.mrf.mxu0
        %v1638 = vadd.f32 %v1445, %v1637
        %v1639 = vpop.f32.mrf.mxu0
        %v1640 = vpop.f32.mrf.mxu0
        %v1641 = vadd.f32 %v1448, %v1640
        %v1642 = vpop.f32.mrf.mxu0
        %1643 = vmatprep.mubr.bf16.mxu0 %v865
        %1644 = vmatmul.mubr.bf16.gmra.mxu0 %v864
        %v1645 = vpop.f32.mrf.mxu0
        %v1646 = vadd.f32 %v1453, %v1645
        %v1647 = vpop.f32.mrf.mxu0
        %v1648 = vpop.f32.mrf.mxu0
        %v1649 = vadd.f32 %v1456, %v1648
        %v1650 = vpop.f32.mrf.mxu0
        %1651 = vmatprep.mubr.bf16.mxu0 %v871
        %1652 = vmatmul.mubr.bf16.gmra.mxu0 %v870
        %v1653 = vpop.f32.mrf.mxu0
        %v1654 = vadd.f32 %v1461, %v1653
        %v1655 = vpop.f32.mrf.mxu0
        %v1656 = vpop.f32.mrf.mxu0
        %v1657 = vadd.f32 %v1464, %v1656
        %v1658 = vpop.f32.mrf.mxu0
        %1659 = vmatprep.mubr.bf16.mxu0 %v877
        %1660 = vmatmul.mubr.bf16.gmra.mxu0 %v876
        %v1661 = vpop.f32.mrf.mxu0
        %v1662 = vadd.f32 %v1469, %v1661
        %v1663 = vpop.f32.mrf.mxu0
        %v1664 = vpop.f32.mrf.mxu0
        %v1665 = vadd.f32 %v1472, %v1664
        %v1666 = vpop.f32.mrf.mxu0
        %1667 = vmatprep.mubr.bf16.mxu0 %v883
        %1668 = vmatmul.mubr.bf16.gmra.mxu0 %v882
        %v1669 = vpop.f32.mrf.mxu0
        %v1670 = vadd.f32 %v1477, %v1669
        %v1671 = vpop.f32.mrf.mxu0
        %v1672 = vpop.f32.mrf.mxu0
        %v1673 = vadd.f32 %v1480, %v1672
        %v1674 = vpop.f32.mrf.mxu0
        %1675 = vmatprep.mubr.bf16.mxu0 %v889
        %1676 = vmatmul.mubr.bf16.gmra.mxu0 %v888
        %v1677 = vpop.f32.mrf.mxu0
        %v1678 = vadd.f32 %v1485, %v1677
        %v1679 = vpop.f32.mrf.mxu0
        %v1680 = vpop.f32.mrf.mxu0
        %v1681 = vadd.f32 %v1488, %v1680
        %v1682 = vpop.f32.mrf.mxu0
        %1683 = vmatprep.mubr.bf16.mxu0 %v895
        %1684 = vmatmul.mubr.bf16.gmra.mxu0 %v894
        %v1685 = vpop.f32.mrf.mxu0
        %v1686 = vadd.f32 %v1493, %v1685
        %v1687 = vpop.f32.mrf.mxu0
        %v1688 = vpop.f32.mrf.mxu0
        %v1689 = vadd.f32 %v1496, %v1688
        %v1690 = vpop.f32.mrf.mxu0
        %1691 = vdwg.mxu0
        %1692 = vmatprep.subr.bf16.mxu0 0
        %1693 = vmatpush1.bf16.msra.mxu0 %v1249
        %1694 = vmatprep.subr.bf16.mxu0 0
        %1695 = vmatpush1.bf16.msra.mxu0 %v1248
        %1696 = vmatprep.subr.bf16.mxu0 0
        %1697 = vmatpush1.bf16.msra.mxu0 %v1247
        %1698 = vmatprep.subr.bf16.mxu0 0
        %1699 = vmatpush1.bf16.msra.mxu0 %v1246
        %1700 = vmatprep.subr.bf16.mxu0 0
        %1701 = vmatpush1.bf16.msra.mxu0 %v1245
        %1702 = vmatprep.subr.bf16.mxu0 0
        %1703 = vmatpush1.bf16.msra.mxu0 %v1244
        %1704 = vmatprep.subr.bf16.mxu0 0
        %1705 = vmatpush1.bf16.msra.mxu0 %v1243
        %1706 = vmatprep.subr.bf16.mxu0 0
        %1707 = vmatpush1.bf16.msra.mxu0 %v1242
        %1708 = vmatprep.subr.bf16.mxu0 0
        %1709 = vmatpush2.bf16.msra.mxu0 %v1257
        %1710 = vmatprep.subr.bf16.mxu0 0
        %1711 = vmatpush2.bf16.msra.mxu0 %v1256
        %1712 = vmatprep.subr.bf16.mxu0 0
        %1713 = vmatpush2.bf16.msra.mxu0 %v1255
        %1714 = vmatprep.subr.bf16.mxu0 0
        %1715 = vmatpush2.bf16.msra.mxu0 %v1254
        %1716 = vmatprep.subr.bf16.mxu0 0
        %1717 = vmatpush2.bf16.msra.mxu0 %v1253
        %1718 = vmatprep.subr.bf16.mxu0 0
        %1719 = vmatpush2.bf16.msra.mxu0 %v1252
        %1720 = vmatprep.subr.bf16.mxu0 0
        %1721 = vmatpush2.bf16.msra.mxu0 %v1251
        %1722 = vmatprep.subr.bf16.mxu0 0
        %1723 = vmatpush2.bf16.msra.mxu0 %v1250
        %1724 = vmatprep.mubr.bf16.mxu0 %v783
        %1725 = vmatmul.mubr.bf16.gmra.mxu0 %v782
        %v1726 = vpop.f32.mrf.mxu0
        %v1727 = vadd.f32 %v1534, %v1726
        %v1728 = vpop.f32.mrf.mxu0
        %v1729 = vpop.f32.mrf.mxu0
        %v1730 = vadd.f32 %v1537, %v1729
        %v1731 = vpop.f32.mrf.mxu0
        %1732 = vmatprep.mubr.bf16.mxu0 %v789
        %1733 = vmatmul.mubr.bf16.gmra.mxu0 %v788
        %v1734 = vpop.f32.mrf.mxu0
        %v1735 = vadd.f32 %v1542, %v1734
        %v1736 = vpop.f32.mrf.mxu0
        %v1737 = vpop.f32.mrf.mxu0
        %v1738 = vadd.f32 %v1545, %v1737
        %v1739 = vpop.f32.mrf.mxu0
        %1740 = vmatprep.mubr.bf16.mxu0 %v795
        %1741 = vmatmul.mubr.bf16.gmra.mxu0 %v794
        %v1742 = vpop.f32.mrf.mxu0
        %v1743 = vadd.f32 %v1550, %v1742
        %v1744 = vpop.f32.mrf.mxu0
        %v1745 = vpop.f32.mrf.mxu0
        %v1746 = vadd.f32 %v1553, %v1745
        %v1747 = vpop.f32.mrf.mxu0
        %1748 = vmatprep.mubr.bf16.mxu0 %v801
        %1749 = vmatmul.mubr.bf16.gmra.mxu0 %v800
        %v1750 = vpop.f32.mrf.mxu0
        %v1751 = vadd.f32 %v1558, %v1750
        %v1752 = vpop.f32.mrf.mxu0
        %v1753 = vpop.f32.mrf.mxu0
        %v1754 = vadd.f32 %v1561, %v1753
        %v1755 = vpop.f32.mrf.mxu0
        %1756 = vmatprep.mubr.bf16.mxu0 %v807
        %1757 = vmatmul.mubr.bf16.gmra.mxu0 %v806
        %v1758 = vpop.f32.mrf.mxu0
        %v1759 = vadd.f32 %v1566, %v1758
        %v1760 = vpop.f32.mrf.mxu0
        %v1761 = vpop.f32.mrf.mxu0
        %v1762 = vadd.f32 %v1569, %v1761
        %v1763 = vpop.f32.mrf.mxu0
        %1764 = vmatprep.mubr.bf16.mxu0 %v813
        %1765 = vmatmul.mubr.bf16.gmra.mxu0 %v812
        %v1766 = vpop.f32.mrf.mxu0
        %v1767 = vadd.f32 %v1574, %v1766
        %v1768 = vpop.f32.mrf.mxu0
        %v1769 = vpop.f32.mrf.mxu0
        %v1770 = vadd.f32 %v1577, %v1769
        %v1771 = vpop.f32.mrf.mxu0
        %1772 = vmatprep.mubr.bf16.mxu0 %v819
        %1773 = vmatmul.mubr.bf16.gmra.mxu0 %v818
        %v1774 = vpop.f32.mrf.mxu0
        %v1775 = vadd.f32 %v1582, %v1774
        %v1776 = vpop.f32.mrf.mxu0
        %v1777 = vpop.f32.mrf.mxu0
        %v1778 = vadd.f32 %v1585, %v1777
        %v1779 = vpop.f32.mrf.mxu0
        %1780 = vmatprep.mubr.bf16.mxu0 %v825
        %1781 = vmatmul.mubr.bf16.gmra.mxu0 %v824
        %v1782 = vpop.f32.mrf.mxu0
        %v1783 = vadd.f32 %v1590, %v1782
        %v1784 = vpop.f32.mrf.mxu0
        %v1785 = vpop.f32.mrf.mxu0
        %v1786 = vadd.f32 %v1593, %v1785
        %v1787 = vpop.f32.mrf.mxu0
        %1788 = vmatprep.mubr.bf16.mxu0 %v831
        %1789 = vmatmul.mubr.bf16.gmra.mxu0 %v830
        %v1790 = vpop.f32.mrf.mxu0
        %v1791 = vadd.f32 %v1598, %v1790
        %v1792 = vpop.f32.mrf.mxu0
        %v1793 = vpop.f32.mrf.mxu0
        %v1794 = vadd.f32 %v1601, %v1793
        %v1795 = vpop.f32.mrf.mxu0
        %1796 = vmatprep.mubr.bf16.mxu0 %v837
        %1797 = vmatmul.mubr.bf16.gmra.mxu0 %v836
        %v1798 = vpop.f32.mrf.mxu0
        %v1799 = vadd.f32 %v1606, %v1798
        %v1800 = vpop.f32.mrf.mxu0
        %v1801 = vpop.f32.mrf.mxu0
        %v1802 = vadd.f32 %v1609, %v1801
        %v1803 = vpop.f32.mrf.mxu0
        %1804 = vmatprep.mubr.bf16.mxu0 %v843
        %1805 = vmatmul.mubr.bf16.gmra.mxu0 %v842
        %v1806 = vpop.f32.mrf.mxu0
        %v1807 = vadd.f32 %v1614, %v1806
        %v1808 = vpop.f32.mrf.mxu0
        %v1809 = vpop.f32.mrf.mxu0
        %v1810 = vadd.f32 %v1617, %v1809
        %v1811 = vpop.f32.mrf.mxu0
        %1812 = vmatprep.mubr.bf16.mxu0 %v849
        %1813 = vmatmul.mubr.bf16.gmra.mxu0 %v848
        %v1814 = vpop.f32.mrf.mxu0
        %v1815 = vadd.f32 %v1622, %v1814
        %v1816 = vpop.f32.mrf.mxu0
        %v1817 = vpop.f32.mrf.mxu0
        %v1818 = vadd.f32 %v1625, %v1817
        %v1819 = vpop.f32.mrf.mxu0
        %1820 = vmatprep.mubr.bf16.mxu0 %v855
        %1821 = vmatmul.mubr.bf16.gmra.mxu0 %v854
        %v1822 = vpop.f32.mrf.mxu0
        %v1823 = vadd.f32 %v1630, %v1822
        %v1824 = vpop.f32.mrf.mxu0
        %v1825 = vpop.f32.mrf.mxu0
        %v1826 = vadd.f32 %v1633, %v1825
        %v1827 = vpop.f32.mrf.mxu0
        %1828 = vmatprep.mubr.bf16.mxu0 %v861
        %1829 = vmatmul.mubr.bf16.gmra.mxu0 %v860
        %v1830 = vpop.f32.mrf.mxu0
        %v1831 = vadd.f32 %v1638, %v1830
        %v1832 = vpop.f32.mrf.mxu0
        %v1833 = vpop.f32.mrf.mxu0
        %v1834 = vadd.f32 %v1641, %v1833
        %v1835 = vpop.f32.mrf.mxu0
        %1836 = vmatprep.mubr.bf16.mxu0 %v867
        %1837 = vmatmul.mubr.bf16.gmra.mxu0 %v866
        %v1838 = vpop.f32.mrf.mxu0
        %v1839 = vadd.f32 %v1646, %v1838
        %v1840 = vpop.f32.mrf.mxu0
        %v1841 = vpop.f32.mrf.mxu0
        %v1842 = vadd.f32 %v1649, %v1841
        %v1843 = vpop.f32.mrf.mxu0
        %1844 = vmatprep.mubr.bf16.mxu0 %v873
        %1845 = vmatmul.mubr.bf16.gmra.mxu0 %v872
        %v1846 = vpop.f32.mrf.mxu0
        %v1847 = vadd.f32 %v1654, %v1846
        %v1848 = vpop.f32.mrf.mxu0
        %v1849 = vpop.f32.mrf.mxu0
        %v1850 = vadd.f32 %v1657, %v1849
        %v1851 = vpop.f32.mrf.mxu0
        %1852 = vmatprep.mubr.bf16.mxu0 %v879
        %1853 = vmatmul.mubr.bf16.gmra.mxu0 %v878
        %v1854 = vpop.f32.mrf.mxu0
        %v1855 = vadd.f32 %v1662, %v1854
        %v1856 = vpop.f32.mrf.mxu0
        %v1857 = vpop.f32.mrf.mxu0
        %v1858 = vadd.f32 %v1665, %v1857
        %v1859 = vpop.f32.mrf.mxu0
        %1860 = vmatprep.mubr.bf16.mxu0 %v885
        %1861 = vmatmul.mubr.bf16.gmra.mxu0 %v884
        %v1862 = vpop.f32.mrf.mxu0
        %v1863 = vadd.f32 %v1670, %v1862
        %v1864 = vpop.f32.mrf.mxu0
        %v1865 = vpop.f32.mrf.mxu0
        %v1866 = vadd.f32 %v1673, %v1865
        %v1867 = vpop.f32.mrf.mxu0
        %1868 = vmatprep.mubr.bf16.mxu0 %v891
        %1869 = vmatmul.mubr.bf16.gmra.mxu0 %v890
        %v1870 = vpop.f32.mrf.mxu0
        %v1871 = vadd.f32 %v1678, %v1870
        %v1872 = vpop.f32.mrf.mxu0
        %v1873 = vpop.f32.mrf.mxu0
        %v1874 = vadd.f32 %v1681, %v1873
        %v1875 = vpop.f32.mrf.mxu0
        %1876 = vmatprep.mubr.bf16.mxu0 %v897
        %1877 = vmatmul.mubr.bf16.gmra.mxu0 %v896
        %v1878 = vpop.f32.mrf.mxu0
        %v1879 = vadd.f32 %v1686, %v1878
        %v1880 = vpop.f32.mrf.mxu0
        %v1881 = vpop.f32.mrf.mxu0
        %v1882 = vadd.f32 %v1689, %v1881
        %v1883 = vpop.f32.mrf.mxu0
        %1884 = vdwg.mxu0
        %vm1885 = vcmask 15360
        %1886 = vst.msk [vmem:[%s192] sm:$0xff] %vm1885, %v1727
        %1887 = vst.msk [vmem:[%s192 + $0x8] sm:$0xff] %vm1885, %v1730
        %1888 = vst.msk [vmem:[%s192 + $0x10] sm:$0xff] %vm1885, %v1735
        %1889 = vst.msk [vmem:[%s192 + $0x18] sm:$0xff] %vm1885, %v1738
        %1890 = vst.msk [vmem:[%s192 + $0x20] sm:$0xff] %vm1885, %v1743
        %1891 = vst.msk [vmem:[%s192 + $0x28] sm:$0xff] %vm1885, %v1746
        %1892 = vst.msk [vmem:[%s192 + $0x30] sm:$0xff] %vm1885, %v1751
        %1893 = vst.msk [vmem:[%s192 + $0x38] sm:$0xff] %vm1885, %v1754
        %1894 = vst.msk [vmem:[%s192 + $0x40] sm:$0xff] %vm1885, %v1759
        %1895 = vst.msk [vmem:[%s192 + $0x48] sm:$0xff] %vm1885, %v1762
        %1896 = vst.msk [vmem:[%s192 + $0x50] sm:$0xff] %vm1885, %v1767
        %1897 = vst.msk [vmem:[%s192 + $0x58] sm:$0xff] %vm1885, %v1770
        %1898 = vst.msk [vmem:[%s192 + $0x60] sm:$0xff] %vm1885, %v1775
        %1899 = vst.msk [vmem:[%s192 + $0x68] sm:$0xff] %vm1885, %v1778
        %1900 = vst.msk [vmem:[%s192 + $0x70] sm:$0xff] %vm1885, %v1783
        %1901 = vst.msk [vmem:[%s192 + $0x78] sm:$0xff] %vm1885, %v1786
        %1902 = vst.msk [vmem:[%s192 + $0x80] sm:$0xff] %vm1885, %v1791
        %1903 = vst.msk [vmem:[%s192 + $0x88] sm:$0xff] %vm1885, %v1794
        %1904 = vst.msk [vmem:[%s192 + $0x90] sm:$0xff] %vm1885, %v1799
        %1905 = vst.msk [vmem:[%s192 + $0x98] sm:$0xff] %vm1885, %v1802
        %1906 = vst.msk [vmem:[%s192 + $0xa0] sm:$0xff] %vm1885, %v1807
        %1907 = vst.msk [vmem:[%s192 + $0xa8] sm:$0xff] %vm1885, %v1810
        %1908 = vst.msk [vmem:[%s192 + $0xb0] sm:$0xff] %vm1885, %v1815
        %1909 = vst.msk [vmem:[%s192 + $0xb8] sm:$0xff] %vm1885, %v1818
        %1910 = vst.msk [vmem:[%s192 + $0xc0] sm:$0xff] %vm1885, %v1823
        %1911 = vst.msk [vmem:[%s192 + $0xc8] sm:$0xff] %vm1885, %v1826
        %1912 = vst.msk [vmem:[%s192 + $0xd0] sm:$0xff] %vm1885, %v1831
        %1913 = vst.msk [vmem:[%s192 + $0xd8] sm:$0xff] %vm1885, %v1834
        %1914 = vst.msk [vmem:[%s192 + $0xe0] sm:$0xff] %vm1885, %v1839
        %1915 = vst.msk [vmem:[%s192 + $0xe8] sm:$0xff] %vm1885, %v1842
        %1916 = vst.msk [vmem:[%s192 + $0xf0] sm:$0xff] %vm1885, %v1847
        %1917 = vst.msk [vmem:[%s192 + $0xf8] sm:$0xff] %vm1885, %v1850
        %1918 = vst.msk [vmem:[%s192 + $0x100] sm:$0xff] %vm1885, %v1855
        %1919 = vst.msk [vmem:[%s192 + $0x108] sm:$0xff] %vm1885, %v1858
        %1920 = vst.msk [vmem:[%s192 + $0x110] sm:$0xff] %vm1885, %v1863
        %1921 = vst.msk [vmem:[%s192 + $0x118] sm:$0xff] %vm1885, %v1866
        %1922 = vst.msk [vmem:[%s192 + $0x120] sm:$0xff] %vm1885, %v1871
        %1923 = vst.msk [vmem:[%s192 + $0x128] sm:$0xff] %vm1885, %v1874
        %1924 = vst.msk [vmem:[%s192 + $0x130] sm:$0xff] %vm1885, %v1879
        %1925 = vst.msk [vmem:[%s192 + $0x138] sm:$0xff] %vm1885, %v1882
        %s1926 = smul.u32 40, %s17
        %p1927 = scmp.lt.s32.totalorder %s1926, 79
        %s1928 = scalar_select %p1927, %s1926, 79
        %s1929 = smul.addr %s1928, 8
        %s1930 = scalar_lea.vmem %s3, %s1929
        // Predicated region
        $region37: #{tpu_custom_call.1} parent=31 // pred_check
          %p1931 = pneg %p103
        $region38: #{tpu_custom_call.1} parent=31 // pred_check_branch
          %1933 = sbr.rel (%p1931) target = $region40
        $region39: #{tpu_custom_call.1} parent=31 // pred_region
          %s1934 = smul.u32 40, %s17
        $region40: #{tpu_custom_call.1} parent=31 // pred_fallthru
          _
      $region32: #{tpu_custom_call.1} parent=5 // pred_fallthru
        _
      %p1935 = scmp.le.s32.totalorder 2, %s12
      // Predicated region
      $region41: #{tpu_custom_call.1} parent=5 // pred_check
        %p1936 = pneg %p1935
      $region42: #{tpu_custom_call.1} parent=5 // pred_check_branch
        %1938 = sbr.rel (%p1936) target = $region44
      $region43: #{tpu_custom_call.1} parent=5 // pred_region
        %s1939 = ssub.s32 %s12, 2
        // Predicated region
        $region45: #{tpu_custom_call.1} parent=43 // pred_check
          %p1940 = pneg %p109
        $region46: #{tpu_custom_call.1} parent=43 // pred_check_branch
          %1942 = sbr.rel (%p1940) target = $region48
        $region47: #{tpu_custom_call.1} parent=43 // pred_region
          %s1943 = smul.u32 40, %s18
          %p1944 = scmp.lt.s32.totalorder %s1943, 79
          %s1945 = scalar_select %p1944, %s1943, 79
          %s1946 = smul.addr %s1945, 8
          %s1947 = scalar_lea.vmem %s3, %s1946
        $region48: #{tpu_custom_call.1} parent=43 // pred_fallthru
          _
      $region44: #{tpu_custom_call.1} parent=5 // pred_fallthru
        _
    $region6: #{tpu_custom_call.1} parent=1 // loop_footer
      %s16 = sadd.s32 1, %s12
    $region7: #{tpu_custom_call.1} parent=1 // loop_footer_branch
      %11 = sbr.rel target = $region3
    $region8: #{tpu_custom_call.1} parent=1 // loop_exit
      _
    %1948 = vsyncpa [#allocation3], 1
    %s1949 = scalar_lea.sflag [#allocation3], 1
    %1950 = vsyncpa %s1949, 1

</llo_original>
